<compile_context>
chip_gen: v5e
topology: v5e:2x2
jax: 0.10.0
libtpu: 0.0.40
codegen_flags: <defaults>
</compile_context>

<pallas_src>
import jax
import jax.numpy as jnp
from jax.experimental import pallas as pl
from jax.experimental.pallas import tpu as pltpu


def _round_up(x, m):
    return (x + m - 1) // m * m


def _block_diag(w, p):
    """blockdiag(w, ..., w) with p copies: (d_in*p, d_out*p)."""
    if p == 1:
        return w
    d_in, d_out = w.shape
    out = jnp.zeros((d_in * p, d_out * p), w.dtype)
    for j in range(p):
        out = out.at[j * d_in:(j + 1) * d_in, j * d_out:(j + 1) * d_out].set(w)
    return out


def _make_mlp_kernel(layer_meta, num_layers, compute_dtype):
    """layer_meta[i] = (is_skip, (off_x, k_x, d_out) | None, (off_h, k_h, d_out))."""

    def kernel(x_ref, w_ref, b_ref, o_ref):
        # Cast to the MXU streaming dtype IN-KERNEL (no extra wrapper HBM pass).
        x_in = x_ref[...].astype(compute_dtype)          # (tm, in_dim*p)
        h = x_in
        for i, (is_skip, wx, wh) in enumerate(layer_meta):
            off_h, k_h, d_out = wh
            if is_skip:
                off_x, k_x, _ = wx
                # torch.cat([in_tensor, x], -1) @ W == x_in@W[:in] + h@W[in:]
                acc = (jnp.dot(x_in, w_ref[off_x:off_x + k_x, :d_out],
                               preferred_element_type=jnp.float32)
                       + jnp.dot(h, w_ref[off_h:off_h + k_h, :d_out],
                                 preferred_element_type=jnp.float32))
            else:
                acc = jnp.dot(h, w_ref[off_h:off_h + k_h, :d_out],
                              preferred_element_type=jnp.float32)
            acc = acc + b_ref[i:i + 1, :d_out]           # f32 bias add
            if i < num_layers - 1:
                h = jnp.maximum(acc, 0.0).astype(compute_dtype)   # nn.ReLU()
            else:
                h = acc                                  # out_activation is None
        o_ref[...] = h.astype(o_ref.dtype)

    return kernel


def deform_mlp_forward(x, weights, biases, skip_connections=None, *,
                       tm=8192, pack=None, compute_dtype=jnp.bfloat16,
                       out_dtype=None, buffer_count=None,
                       vmem_limit_bytes=None):
    """DeformMLP forward.

    x:       (N, in_dim)  (any float dtype; cast to `compute_dtype` in-kernel)
    weights: list of (d_in_i, d_out_i) arrays (transposed vs torch nn.Linear)
    biases:  list of (d_out_i,) arrays
    """
    N, in_dim = x.shape
    num_layers = len(weights)
    out_dim = int(weights[-1].shape[1])
    skip = set(skip_connections or ())
    if out_dtype is None:
        out_dtype = x.dtype

    # ---- lane packing factor (block-diagonal weights) -----------------------
    # p independent rows share one lane-row; pure row-major reshape => free.
    if pack is None:
        pack = 2 if N % 2 == 0 else 1       # pack=4 worth sweeping on v6e/v7x
    assert N % pack == 0, "N must be divisible by pack"
    n_rows = N // pack                      # packed row count
    in_p, out_p = in_dim * pack, out_dim * pack

    x_packed = x.reshape(n_rows, in_p)      # free (row-major) reshape, no HBM pass

    # ---- one constant weight slab + layer metadata --------------------------
    slab_w = max(int(w.shape[1]) for w in weights) * pack
    pieces, layer_meta = [], []
    row, flops = 0, 0
    for i, w in enumerate(weights):
        d_in, d_out = int(w.shape[0]), int(w.shape[1])
        flops += 2 * N * d_in * d_out
        parts = [w[:in_dim], w[in_dim:]] if i in skip else [w]
        offs = []
        for part in parts:
            wp = _block_diag(part, pack).astype(compute_dtype)
            k, dout_p = int(wp.shape[0]), int(wp.shape[1])
            k_pad = _round_up(k, 8)                      # 8-aligned piece start
            piece = jnp.zeros((k_pad, slab_w), compute_dtype)
            piece = piece.at[:k, :dout_p].set(wp)
            pieces.append(piece)
            offs.append((row, k, dout_p))
            row += k_pad
        if i in skip:
            layer_meta.append((True, offs[0], offs[1]))
        else:
            layer_meta.append((False, None, offs[0]))
    w_slab = jnp.concatenate(pieces, axis=0)             # (sum_k_pad, slab_w)

    # Packed f32 biases: row i = [b_i, b_i, ... (pack copies)].
    bias_pack = jnp.zeros((num_layers, slab_w), jnp.float32)
    for i, b in enumerate(biases):
        bias_pack = bias_pack.at[i, :int(b.shape[0]) * pack].set(
            jnp.tile(b.astype(jnp.float32), pack))

    # ---- row tile: large (amortize per-step overhead), VMEM-bounded, grid>=2
    x_bytes = jnp.dtype(x.dtype).itemsize
    o_bytes = jnp.dtype(out_dtype).itemsize
    c_bytes = jnp.dtype(compute_dtype).itemsize
    const_bytes = int(w_slab.size) * c_bytes + int(bias_pack.size) * 4

    def footprint(t):
        tiles = 2 * (t * in_p * x_bytes + t * out_p * o_bytes)   # double-buffered
        interm = t * slab_w * 4 * 3 + t * in_p * c_bytes         # live f32 acts
        return tiles + interm + const_bytes

    tm = _round_up(max(8, min(int(tm), _round_up(n_rows, 8))), 8)
    while tm > 8 and footprint(tm) > 48 * 1024 * 1024:           # stay well in VMEM
        tm = _round_up(tm // 2, 8)
    grid = pl.cdiv(n_rows, tm)
    if grid < 2 and n_rows >= 16:
        # v7x megacore: keep >=2 grid steps so "parallel" spans both TCs.
        tm = _round_up(pl.cdiv(n_rows, 2), 8)
        grid = pl.cdiv(n_rows, tm)

    if vmem_limit_bytes is None:
        vmem_limit_bytes = int(min(max(footprint(tm) * 3 // 2, 16 * 2**20),
                                   60 * 2**20))

    bs_kwargs = {}
    if buffer_count:
        bs_kwargs["pipeline_mode"] = pl.Buffered(buffer_count)
    in_specs = [
        pl.BlockSpec((tm, in_p), lambda i: (i, 0), **bs_kwargs),   # x (orig dtype)
        pl.BlockSpec(w_slab.shape, lambda i: (0, 0)),              # weight slab
        pl.BlockSpec(bias_pack.shape, lambda i: (0, 0)),           # bias pack
    ]
    out_spec = pl.BlockSpec((tm, out_p), lambda i: (i, 0), **bs_kwargs)

    kernel = _make_mlp_kernel(tuple(layer_meta), num_layers, compute_dtype)

    bytes_accessed = (N * in_dim * x_bytes + N * out_dim * o_bytes + const_bytes)

    fn = pl.pallas_call(
        kernel,
        out_shape=jax.ShapeDtypeStruct((n_rows, out_p), out_dtype),
        grid_spec=pltpu.PrefetchScalarGridSpec(
            num_scalar_prefetch=0,
            grid=(grid,),
            in_specs=in_specs,
            out_specs=out_spec,
        ),
        compiler_params=pltpu.CompilerParams(
            dimension_semantics=("parallel",),
            vmem_limit_bytes=int(vmem_limit_bytes),
        ),
        cost_estimate=pl.CostEstimate(
            flops=int(flops), transcendentals=0,
            bytes_accessed=int(bytes_accessed)),
    )
    out = fn(x_packed, w_slab, bias_pack)
    return out.reshape(N, out_dim)          # free (row-major) reshape back


def init_deform_mlp_params(key, in_dim, num_layers, layer_width, out_dim,
                           skip_connections=None):
    """Deterministic synthetic parameters with the shapes nn.Linear builds."""
    skip = set(skip_connections or ())
    dims = []
    if num_layers == 1:
        dims.append((in_dim, out_dim))
    else:
        for i in range(num_layers - 1):
            if i == 0:
                dims.append((in_dim, layer_width))
            elif i in skip:
                dims.append((layer_width + in_dim, layer_width))
            else:
                dims.append((layer_width, layer_width))
        dims.append((layer_width, out_dim))

    weights, biases = [], []
    for (d_in, d_out) in dims:
        key, kw, kb = jax.random.split(key, 3)
        bound = 1.0 / jnp.sqrt(d_in)
        # torch Linear default: uniform(-1/sqrt(fan_in), 1/sqrt(fan_in))
        weights.append(jax.random.uniform(kw, (d_in, d_out), jnp.float32,
                                          minval=-bound, maxval=bound))
        biases.append(jax.random.uniform(kb, (d_out,), jnp.float32,
                                         minval=-bound, maxval=bound))
    return weights, biases


def deform_mlp_reference(x, weights, biases, skip_connections=None):
    skip = set(skip_connections or ())
    x_in = x
    h = x
    n = len(weights)
    for i, (w, b) in enumerate(zip(weights, biases)):
        if i in skip:
            h = jnp.concatenate([x_in, h], axis=-1)
        h = h @ w + b
        if i < n - 1:
            h = jnp.maximum(h, 0.0)
    return h


if __name__ == "__main__":
    # Config consistent with the module:
    #   DeformMLP(in_dim=16, num_layers=4, layer_width=64, out_dim=32,
    #             skip_connections=(2,), activation=ReLU, out_activation=None)
    in_dim, num_layers, layer_width, out_dim = 16, 4, 64, 32
    skip_connections = (2,)
    N = 1000  # not a multiple of the row tile -> exercises masked ragged tile

    key = jax.random.PRNGKey(0)
    key, kx = jax.random.split(key)
    x = jax.random.normal(kx, (N, in_dim), jnp.float32)

    weights, biases = init_deform_mlp_params(
        key, in_dim, num_layers, layer_width, out_dim, skip_connections)

    ref = deform_mlp_reference(x, weights, biases, skip_connections)

    # f32 compute path (pack=2): structural check against the JAX reference.
    # (MXU f32 is not bit-exact vs XLA; 1e-4 tolerance, same as before.)
    out_f32 = deform_mlp_forward(x, weights, biases, skip_connections,
                                 compute_dtype=jnp.float32)
    out_f32 = jax.block_until_ready(out_f32)
    assert out_f32.shape == (N, out_dim)
    assert jnp.allclose(out_f32, ref, atol=1e-4, rtol=1e-4), \
        "f32 path mismatch vs JAX reference"

    # Odd N -> pack falls back to 1; also exercises the masked last tile.
    out_odd = deform_mlp_forward(x[:997], weights, biases, skip_connections,
                                 compute_dtype=jnp.float32)
    out_odd = jax.block_until_ready(out_odd)
    assert out_odd.shape == (997, out_dim)
    assert jnp.allclose(out_odd, ref[:997], atol=1e-4, rtol=1e-4), \
        "odd-N (pack=1) path mismatch vs JAX reference"

    # Default bf16 streaming path (pack=2), f32 accumulation.
    out_bf16 = deform_mlp_forward(x, weights, biases, skip_connections)
    out_bf16 = jax.block_until_ready(out_bf16)
    assert out_bf16.shape == (N, out_dim)
    assert jnp.allclose(out_bf16.astype(jnp.float32), ref,
                        atol=5e-2, rtol=5e-2), \
        "bf16 path mismatch vs JAX reference"

    # pack=4 path (targets the 256-wide MXU of v6e/v7x); numerics unchanged.
    out_p4 = deform_mlp_forward(x, weights, biases, skip_connections, pack=4)
    out_p4 = jax.block_until_ready(out_p4)
    assert jnp.allclose(out_p4.astype(jnp.float32), ref,
                        atol=5e-2, rtol=5e-2), \
        "pack=4 path mismatch vs JAX reference"

    print("KERNEL_OK")
</pallas_src>

<mosaic_0001>
module attributes {stable_mosaic.version = 11 : i64} {
  func.func @kernel(%arg0: i32, %arg1: memref<256x32xf32, #tpu.memory_space<vmem>>, %arg2: memref<448x128xf32, #tpu.memory_space<vmem>>, %arg3: memref<4x128xf32, #tpu.memory_space<vmem>>, %arg4: memref<256x64xf32, #tpu.memory_space<vmem>>) attributes {dimension_semantics = [#tpu.dimension_semantics<parallel>], iteration_bounds = array<i64: 2>, scalar_prefetch = 0 : i64, scratch_operands = 0 : i64, tpu.core_type = #tpu.core_type<tc>, window_params = [{transform_indices = @transform_0, window_bounds = array<i64: 256, 32>}, {pipeline_mode = #tpu.pipeline_mode<synchronous>, transform_indices = @transform_1, window_bounds = array<i64: 448, 128>}, {pipeline_mode = #tpu.pipeline_mode<synchronous>, transform_indices = @transform_2, window_bounds = array<i64: 4, 128>}, {transform_indices = @transform_3, window_bounds = array<i64: 256, 64>}]} {
    %c0 = arith.constant 0 : index
    %c0_0 = arith.constant 0 : index
    %0 = vector.load %arg1[%c0, %c0_0] : memref<256x32xf32, #tpu.memory_space<vmem>>, vector<256x32xf32>
    %c0_1 = arith.constant 0 : index
    %c0_2 = arith.constant 0 : index
    %1 = vector.load %arg2[%c0_1, %c0_2] : memref<448x128xf32, #tpu.memory_space<vmem>>, vector<32x128xf32>
    %cst = arith.constant dense<0.000000e+00> : vector<256x128xf32>
    %2 = tpu.matmul %0, %1, %cst {dimension_numbers = #tpu.dot_dimension_numbers<[1], [0], [0], [1], [0, 0, 1, 1], [], []>} : vector<256x32xf32>, vector<32x128xf32>, vector<256x128xf32> -> vector<256x128xf32>
    %c0_3 = arith.constant 0 : index
    %c0_4 = arith.constant 0 : index
    %3 = vector.load %arg3[%c0_3, %c0_4] : memref<4x128xf32, #tpu.memory_space<vmem>>, vector<1x128xf32>
    %4 = vector.broadcast %3 : vector<1x128xf32> to vector<256x128xf32>
    %5 = arith.addf %2, %4 : vector<256x128xf32>
    %cst_5 = arith.constant 0.000000e+00 : f32
    %6 = vector.broadcast %cst_5 : f32 to vector<256x128xf32>
    %7 = arith.maximumf %5, %6 : vector<256x128xf32>
    %c32 = arith.constant 32 : index
    %c0_6 = arith.constant 0 : index
    %8 = vector.load %arg2[%c32, %c0_6] : memref<448x128xf32, #tpu.memory_space<vmem>>, vector<128x128xf32>
    %cst_7 = arith.constant dense<0.000000e+00> : vector<256x128xf32>
    %9 = tpu.matmul %7, %8, %cst_7 {dimension_numbers = #tpu.dot_dimension_numbers<[1], [0], [0], [1], [0, 0, 1, 1], [], []>} : vector<256x128xf32>, vector<128x128xf32>, vector<256x128xf32> -> vector<256x128xf32>
    %c1 = arith.constant 1 : index
    %c0_8 = arith.constant 0 : index
    %10 = vector.load %arg3[%c1, %c0_8] : memref<4x128xf32, #tpu.memory_space<vmem>>, vector<1x128xf32>
    %11 = vector.broadcast %10 : vector<1x128xf32> to vector<256x128xf32>
    %12 = arith.addf %9, %11 : vector<256x128xf32>
    %cst_9 = arith.constant 0.000000e+00 : f32
    %13 = vector.broadcast %cst_9 : f32 to vector<256x128xf32>
    %14 = arith.maximumf %12, %13 : vector<256x128xf32>
    %c160 = arith.constant 160 : index
    %c0_10 = arith.constant 0 : index
    %15 = vector.load %arg2[%c160, %c0_10] : memref<448x128xf32, #tpu.memory_space<vmem>>, vector<32x128xf32>
    %cst_11 = arith.constant dense<0.000000e+00> : vector<256x128xf32>
    %16 = tpu.matmul %0, %15, %cst_11 {dimension_numbers = #tpu.dot_dimension_numbers<[1], [0], [0], [1], [0, 0, 1, 1], [], []>} : vector<256x32xf32>, vector<32x128xf32>, vector<256x128xf32> -> vector<256x128xf32>
    %c192 = arith.constant 192 : index
    %c0_12 = arith.constant 0 : index
    %17 = vector.load %arg2[%c192, %c0_12] : memref<448x128xf32, #tpu.memory_space<vmem>>, vector<128x128xf32>
    %cst_13 = arith.constant dense<0.000000e+00> : vector<256x128xf32>
    %18 = tpu.matmul %14, %17, %cst_13 {dimension_numbers = #tpu.dot_dimension_numbers<[1], [0], [0], [1], [0, 0, 1, 1], [], []>} : vector<256x128xf32>, vector<128x128xf32>, vector<256x128xf32> -> vector<256x128xf32>
    %19 = arith.addf %16, %18 : vector<256x128xf32>
    %c2 = arith.constant 2 : index
    %c0_14 = arith.constant 0 : index
    %20 = vector.load %arg3[%c2, %c0_14] : memref<4x128xf32, #tpu.memory_space<vmem>>, vector<1x128xf32>
    %21 = vector.broadcast %20 : vector<1x128xf32> to vector<256x128xf32>
    %22 = arith.addf %19, %21 : vector<256x128xf32>
    %cst_15 = arith.constant 0.000000e+00 : f32
    %23 = vector.broadcast %cst_15 : f32 to vector<256x128xf32>
    %24 = arith.maximumf %22, %23 : vector<256x128xf32>
    %c320 = arith.constant 320 : index
    %c0_16 = arith.constant 0 : index
    %25 = vector.load %arg2[%c320, %c0_16] : memref<448x128xf32, #tpu.memory_space<vmem>>, vector<128x64xf32>
    %cst_17 = arith.constant dense<0.000000e+00> : vector<256x64xf32>
    %26 = tpu.matmul %24, %25, %cst_17 {dimension_numbers = #tpu.dot_dimension_numbers<[1], [0], [0], [1], [0, 0, 1, 1], [], []>} : vector<256x128xf32>, vector<128x64xf32>, vector<256x64xf32> -> vector<256x64xf32>
    %c3 = arith.constant 3 : index
    %c0_18 = arith.constant 0 : index
    %27 = vector.load %arg3[%c3, %c0_18] : memref<4x128xf32, #tpu.memory_space<vmem>>, vector<1x64xf32>
    %28 = vector.broadcast %27 : vector<1x64xf32> to vector<256x64xf32>
    %29 = arith.addf %26, %28 : vector<256x64xf32>
    %c0_19 = arith.constant 0 : index
    %c0_20 = arith.constant 0 : index
    %30 = vector.load %arg4[%c0_19, %c0_20] : memref<256x64xf32, #tpu.memory_space<vmem>>, vector<256x64xf32>
    tpu.vector_store %arg4[%c0_19, %c0_20], %29 {strides = array<i32>} : memref<256x64xf32, #tpu.memory_space<vmem>>, vector<256x64xf32>,
    return
  }
  func.func @transform_0(%arg0: i32) -> (i32, i32) {
    %c0_i32 = arith.constant 0 : i32
    %c0_i32_0 = arith.constant 0 : i32
    return %arg0, %c0_i32 : i32, i32
  }
  func.func @transform_1(%arg0: i32) -> (i32, i32) {
    %c0_i32 = arith.constant 0 : i32
    %c0_i32_0 = arith.constant 0 : i32
    %c0_i32_1 = arith.constant 0 : i32
    return %c0_i32, %c0_i32_0 : i32, i32
  }
  func.func @transform_2(%arg0: i32) -> (i32, i32) {
    %c0_i32 = arith.constant 0 : i32
    %c0_i32_0 = arith.constant 0 : i32
    %c0_i32_1 = arith.constant 0 : i32
    return %c0_i32, %c0_i32_0 : i32, i32
  }
  func.func @transform_3(%arg0: i32) -> (i32, i32) {
    %c0_i32 = arith.constant 0 : i32
    %c0_i32_0 = arith.constant 0 : i32
    return %arg0, %c0_i32 : i32, i32
  }
}

</mosaic_0001>

<llo_original>
// kernel: tpu_custom_call.1
$region0: #{tpu_custom_call.1}
  #allocation0 [shape = 'u32[]', space=smem, size = 0x4, offset = 0x4, fixed_abs, tag = 'smem constant byte address 0x4 - core index']
  #allocation1 [shape = 'u32[72,128]{1,0:T(1,128)}', space=vmem, size = 0x9000, scoped, tag = 'internal scratch']
  %s0 = inlined_call_operand.vmem [shape: f32[500,32], index: 0, kind: input, shape index: {}]
  %s1 = inlined_call_operand.vmem [shape: f32[448,128], index: 1, kind: input, shape index: {}]
  %s2 = inlined_call_operand.vmem [shape: f32[4,128], index: 2, kind: input, shape index: {}]
  %s3 = inlined_call_operand.vmem [shape: f32[500,64], index: 3, kind: output, shape index: {}]
  %s4 = sld [smem:[#allocation0]]
  $region93: #{tpu_custom_call.1} parent=0
    _
  %s6 = ssub.s32 1, %s4
  %s7 = scalar_select 0, %s6, %s4
  $region1: #{tpu_custom_call.1} parent=0
    #allocation2 [shape = 'u8[262144]{0}', space=vmem, size = 0x40000, scoped, tag = 'output window, operand 0']
    loop: start=0, step=1, limit=4
    $region2: #{tpu_custom_call.1} parent=1 // loop_pre_header
      _
    $region3: #{tpu_custom_call.1} parent=1 // loop_header
      %s9 = sphi 0, %s13
      %p10 = scmp.ge.s32.totalorder %s9, 4
      %s19 = sphi 0, %s21
      %s22 = sphi 0, %s19
      %s23 = sphi 0, %s22
      %s39 = sphi 0, %s23
      %s43 = sphi 0, %s43
      %s45 = sphi 0, %s43
      %s46 = sphi 0, %s45
      %s60 = sphi 0, %s46
      %s64 = sphi 0, %s64
      %s66 = sphi 0, %s64
      %s67 = sphi 0, %s66
      %s81 = sphi 0, %s67
      %s87 = sphi 0, %s89
      %s90 = sphi 0, %s87
      %s91 = sphi 0, %s90
      %s107 = sphi 0, %s91
    $region4: #{tpu_custom_call.1} parent=1 // loop_header_branch
      %12 = sbr.rel (%p10) target = $region8
    $region5: #{tpu_custom_call.1} parent=1 // loop_body
      %s14 = ssub.s32 %s9, 1
      %s15 = ssub.s32 %s9, 2
      %s16 = sadd.s32 %s9, 1
      %s17 = ssub.s32 %s9, %s16
      %p18 = scmp.eq.s32.totalorder %s17, 0
      %s20 = sadd.s32 %s19, 1
      %s21 = scalar_select %p18, %s19, %s20
      %p24 = pneg %p18
      %p25 = scmp.eq.s32.totalorder %s9, 1
      %p26 = por %p24, %p25
      %p27 = scmp.ne.s32.totalorder %s19, %s22
      %p28 = scmp.eq.s32.totalorder %s9, 0
      %p29 = por %p27, %p28
      %p30 = scmp.ne.s32.totalorder %s19, %s22
      %p31 = scmp.eq.s32.totalorder %s14, 1
      %p32 = por %p30, %p31
      %p33 = scmp.ne.s32.totalorder %s22, %s23
      %p34 = scmp.eq.s32.totalorder %s14, 0
      %p35 = por %p33, %p34
      %p36 = scmp.ne.s32.totalorder %s22, %s23
      %p37 = scmp.eq.s32.totalorder %s15, 1
      %p38 = por %p36, %p37
      %p40 = scmp.ne.s32.totalorder %s23, %s39
      %p41 = scmp.eq.s32.totalorder %s15, 0
      %p42 = por %p40, %p41
      %s44 = sadd.s32 %s43, 1
      %p47 = scmp.eq.s32.totalorder %s9, 1
      %p48 = scmp.ne.s32.totalorder %s43, %s45
      %p49 = scmp.eq.s32.totalorder %s9, 0
      %p50 = por %p48, %p49
      %p51 = scmp.ne.s32.totalorder %s43, %s45
      %p52 = scmp.eq.s32.totalorder %s14, 1
      %p53 = por %p51, %p52
      %p54 = scmp.ne.s32.totalorder %s45, %s46
      %p55 = scmp.eq.s32.totalorder %s14, 0
      %p56 = por %p54, %p55
      %p57 = scmp.ne.s32.totalorder %s45, %s46
      %p58 = scmp.eq.s32.totalorder %s15, 1
      %p59 = por %p57, %p58
      %p61 = scmp.ne.s32.totalorder %s46, %s60
      %p62 = scmp.eq.s32.totalorder %s15, 0
      %p63 = por %p61, %p62
      %s65 = sadd.s32 %s64, 1
      %p68 = scmp.eq.s32.totalorder %s9, 1
      %p69 = scmp.ne.s32.totalorder %s64, %s66
      %p70 = scmp.eq.s32.totalorder %s9, 0
      %p71 = por %p69, %p70
      %p72 = scmp.ne.s32.totalorder %s64, %s66
      %p73 = scmp.eq.s32.totalorder %s14, 1
      %p74 = por %p72, %p73
      %p75 = scmp.ne.s32.totalorder %s66, %s67
      %p76 = scmp.eq.s32.totalorder %s14, 0
      %p77 = por %p75, %p76
      %p78 = scmp.ne.s32.totalorder %s66, %s67
      %p79 = scmp.eq.s32.totalorder %s15, 1
      %p80 = por %p78, %p79
      %p82 = scmp.ne.s32.totalorder %s67, %s81
      %p83 = scmp.eq.s32.totalorder %s15, 0
      %p84 = por %p82, %p83
      %s85 = ssub.s32 %s9, %s16
      %p86 = scmp.eq.s32.totalorder %s85, 0
      %s88 = sadd.s32 %s87, 1
      %s89 = scalar_select %p86, %s87, %s88
      %p92 = pneg %p86
      %p93 = scmp.eq.s32.totalorder %s9, 1
      %p94 = por %p92, %p93
      %p95 = scmp.ne.s32.totalorder %s87, %s90
      %p96 = scmp.eq.s32.totalorder %s9, 0
      %p97 = por %p95, %p96
      %p98 = scmp.ne.s32.totalorder %s87, %s90
      %p99 = scmp.eq.s32.totalorder %s14, 1
      %p100 = por %p98, %p99
      %p101 = scmp.ne.s32.totalorder %s90, %s91
      %p102 = scmp.eq.s32.totalorder %s14, 0
      %p103 = por %p101, %p102
      %p104 = scmp.ne.s32.totalorder %s90, %s91
      %p105 = scmp.eq.s32.totalorder %s15, 1
      %p106 = por %p104, %p105
      %p108 = scmp.ne.s32.totalorder %s91, %s107
      %p109 = scmp.eq.s32.totalorder %s15, 0
      %p110 = por %p108, %p109
      %p111 = scmp.le.s32.totalorder 1, %s9
      %p112 = scmp.lt.s32.totalorder %s9, 3
      %p113 = pnand %p111, %p112
      %p114 = pneg %p113
      // Predicated region
      $region9: #{tpu_custom_call.1} parent=5 // pred_check
        _
      $region10: #{tpu_custom_call.1} parent=5 // pred_check_branch
        %116 = sbr.rel (%p113) target = $region12
      $region11: #{tpu_custom_call.1} parent=5 // pred_region
        %s117 = ssub.s32 %s9, 1
        // Predicated region
        $region13: #{tpu_custom_call.1} parent=11 // pred_check
          %p118 = pneg %p56
        $region14: #{tpu_custom_call.1} parent=11 // pred_check_branch
          %120 = sbr.rel (%p118) target = $region16
        $region15: #{tpu_custom_call.1} parent=11 // pred_region
          _
        $region16: #{tpu_custom_call.1} parent=11 // pred_fallthru
          _
        // Predicated region
        $region17: #{tpu_custom_call.1} parent=11 // pred_check
          %p121 = pneg %p77
        $region18: #{tpu_custom_call.1} parent=11 // pred_check_branch
          %123 = sbr.rel (%p121) target = $region20
        $region19: #{tpu_custom_call.1} parent=11 // pred_region
          _
        $region20: #{tpu_custom_call.1} parent=11 // pred_fallthru
          _
      $region12: #{tpu_custom_call.1} parent=5 // pred_fallthru
        _
      %p124 = scmp.lt.s32.totalorder %s9, 2
      // Predicated region
      $region21: #{tpu_custom_call.1} parent=5 // pred_check
        %p125 = pneg %p124
      $region22: #{tpu_custom_call.1} parent=5 // pred_check_branch
        %127 = sbr.rel (%p125) target = $region24
      $region23: #{tpu_custom_call.1} parent=5 // pred_region
        // Predicated region
        $region25: #{tpu_custom_call.1} parent=23 // pred_check
          %p128 = pneg %p29
        $region26: #{tpu_custom_call.1} parent=23 // pred_check_branch
          %130 = sbr.rel (%p128) target = $region28
        $region27: #{tpu_custom_call.1} parent=23 // pred_region
          %s131 = smul.u32 32, %s9
          %s132 = ssub.s32 63, %s131
          %p133 = scmp.lt.s32.totalorder %s132, 32
          %s134 = scalar_select %p133, %s132, 32
          %s135 = smul.u32 8, %s134
          %p136 = scmp.lt.s32.totalorder %s131, 62
          %s137 = scalar_select %p136, %s131, 62
          %s138 = smul.addr %s137, 8
          %s139 = scalar_lea.vmem %s0, %s138
          %s140 = smul.u32 32, %s9
          %s141 = ssub.s32 63, %s140
          %p142 = scmp.lt.s32.totalorder %s141, 32
          %s143 = scalar_select %p142, %s141, 32
          %s144 = smul.u32 8, %s143
        $region28: #{tpu_custom_call.1} parent=23 // pred_fallthru
          _
      $region24: #{tpu_custom_call.1} parent=5 // pred_fallthru
        _
      %p145 = scmp.le.s32.totalorder 1, %s9
      %p146 = scmp.lt.s32.totalorder %s9, 3
      %p147 = pnand %p145, %p146
      %p148 = pneg %p147
      // Predicated region
      $region29: #{tpu_custom_call.1} parent=5 // pred_check
        _
      $region30: #{tpu_custom_call.1} parent=5 // pred_check_branch
        %150 = sbr.rel (%p147) target = $region32
      $region31: #{tpu_custom_call.1} parent=5 // pred_region
        %s151 = ssub.s32 %s9, 1
        %s152 = smul.u32 32, %s14
        %s153 = ssub.s32 63, %s152
        %p154 = scmp.lt.s32.totalorder %s153, 32
        %s155 = scalar_select %p154, %s153, 32
        %s156 = smul.u32 8, %s155
        %p157 = scmp.lt.s32.totalorder %s152, 62
        %s158 = scalar_select %p157, %s152, 62
        %s159 = smul.addr %s158, 8
        %s160 = scalar_lea.vmem %s0, %s159
        %p161 = pneg %p35
        %p162 = pneg %p32
        %p163 = pneg %p56
        %p164 = pneg %p53
        %p165 = pneg %p77
        %p166 = pneg %p74
        %p167 = pneg %p103
        %p168 = pneg %p100
        %s169 = sand.u32 %s90, 1
        %s170 = sand.u32 %s90, 1
        %s171 = smul.addr %s170, 256
        %s172 = scalar_lea.vmem [#allocation2], %s171
        %s173 = smul.u32 32, %s14
        %s174 = ssub.s32 63, %s173
        %p175 = scmp.lt.s32.totalorder %s174, 32
        %s176 = scalar_select %p175, %s174, 32
        %s177 = smul.u32 8, %s176
        %p178 = scmp.lt.s32.totalorder %s173, 62
        %s179 = scalar_select %p178, %s173, 62
        %s180 = smul.addr %s179, 8
        %s181 = scalar_lea.vmem %s0, %s180
        %s182 = smul.u32 32, %s14
        %s183 = ssub.s32 63, %s182
        %p184 = scmp.lt.s32.totalorder %s183, 32
        %s185 = scalar_select %p184, %s183, 32
        %s186 = smul.u32 8, %s185
        %s187 = smul.u32 32, %s14
        %s188 = ssub.s32 63, %s187
        %p189 = scmp.lt.s32.totalorder %s188, 32
        %s190 = scalar_select %p189, %s188, 32
        %s191 = smul.u32 8, %s190
        %v192 = vld [vmem:[%s181] sm:$0xff]
        %v193 = vld [vmem:[%s181 + $0x8] sm:$0xff]
        %v194 = vld [vmem:[%s181 + $0x10] sm:$0xff]
        %v195 = vld [vmem:[%s181 + $0x18] sm:$0xff]
        %v196 = vld [vmem:[%s181 + $0x20] sm:$0xff]
        %v197 = vld [vmem:[%s181 + $0x28] sm:$0xff]
        %v198 = vld [vmem:[%s181 + $0x30] sm:$0xff]
        %v199 = vld [vmem:[%s181 + $0x38] sm:$0xff]
        %v200 = vld [vmem:[%s181 + $0x40] sm:$0xff]
        %v201 = vld [vmem:[%s181 + $0x48] sm:$0xff]
        %v202 = vld [vmem:[%s181 + $0x50] sm:$0xff]
        %v203 = vld [vmem:[%s181 + $0x58] sm:$0xff]
        %v204 = vld [vmem:[%s181 + $0x60] sm:$0xff]
        %v205 = vld [vmem:[%s181 + $0x68] sm:$0xff]
        %v206 = vld [vmem:[%s181 + $0x70] sm:$0xff]
        %v207 = vld [vmem:[%s181 + $0x78] sm:$0xff]
        %v208 = vld [vmem:[%s181 + $0x80] sm:$0xff]
        %v209 = vld [vmem:[%s181 + $0x88] sm:$0xff]
        %v210 = vld [vmem:[%s181 + $0x90] sm:$0xff]
        %v211 = vld [vmem:[%s181 + $0x98] sm:$0xff]
        %v212 = vld [vmem:[%s181 + $0xa0] sm:$0xff]
        %v213 = vld [vmem:[%s181 + $0xa8] sm:$0xff]
        %v214 = vld [vmem:[%s181 + $0xb0] sm:$0xff]
        %v215 = vld [vmem:[%s181 + $0xb8] sm:$0xff]
        %v216 = vld [vmem:[%s181 + $0xc0] sm:$0xff]
        %v217 = vld [vmem:[%s181 + $0xc8] sm:$0xff]
        %v218 = vld [vmem:[%s181 + $0xd0] sm:$0xff]
        %v219 = vld [vmem:[%s181 + $0xd8] sm:$0xff]
        %v220 = vld [vmem:[%s181 + $0xe0] sm:$0xff]
        %v221 = vld [vmem:[%s181 + $0xe8] sm:$0xff]
        %v222 = vld [vmem:[%s181 + $0xf0] sm:$0xff]
        %v223 = vld [vmem:[%s181 + $0xf8] sm:$0xff]
        %v224 = vld [vmem:[%s1] sm:$0xff]
        %v225 = vld [vmem:[%s1 + $0x8] sm:$0xff]
        %v226 = vld [vmem:[%s1 + $0x10] sm:$0xff]
        %v227 = vld [vmem:[%s1 + $0x18] sm:$0xff]
        %v228 = vld [vmem:[%s2] sm:$0x1]
        %v229 = vperm.slane %v228, 0
        %vm230 = vcmask 261120
        %v232 = vsel %vm230, %v192, 0
        %v235 = vsel %vm230, %v193, 0
        %v238 = vsel %vm230, %v194, 0
        %v241 = vsel %vm230, %v195, 0
        %v244 = vsel %vm230, %v196, 0
        %v247 = vsel %vm230, %v197, 0
        %v250 = vsel %vm230, %v198, 0
        %v253 = vsel %vm230, %v199, 0
        %v256 = vsel %vm230, %v200, 0
        %v259 = vsel %vm230, %v201, 0
        %v262 = vsel %vm230, %v202, 0
        %v265 = vsel %vm230, %v203, 0
        %v268 = vsel %vm230, %v204, 0
        %v271 = vsel %vm230, %v205, 0
        %v274 = vsel %vm230, %v206, 0
        %v277 = vsel %vm230, %v207, 0
        %v280 = vsel %vm230, %v208, 0
        %v283 = vsel %vm230, %v209, 0
        %v286 = vsel %vm230, %v210, 0
        %v289 = vsel %vm230, %v211, 0
        %v292 = vsel %vm230, %v212, 0
        %v295 = vsel %vm230, %v213, 0
        %v298 = vsel %vm230, %v214, 0
        %v301 = vsel %vm230, %v215, 0
        %v304 = vsel %vm230, %v216, 0
        %v307 = vsel %vm230, %v217, 0
        %v310 = vsel %vm230, %v218, 0
        %v313 = vsel %vm230, %v219, 0
        %v316 = vsel %vm230, %v220, 0
        %v319 = vsel %vm230, %v221, 0
        %v322 = vsel %vm230, %v222, 0
        %v325 = vsel %vm230, %v223, 0
        %327 = vmatpush.msra.mxu0 0.0
        %328 = vmatpush.msra.mxu0 0.0
        %329 = vmatpush.msra.mxu0 0.0
        %330 = vmatpush.msra.mxu0 0.0
        %331 = vmatpush.msra.mxu0 0.0
        %332 = vmatpush.msra.mxu0 0.0
        %333 = vmatpush.msra.mxu0 0.0
        %334 = vmatpush.msra.mxu0 0.0
        %335 = vmatpush.msra.mxu0 0.0
        %336 = vmatpush.msra.mxu0 0.0
        %337 = vmatpush.msra.mxu0 0.0
        %338 = vmatpush.msra.mxu0 0.0
        %339 = vmatpush.msra.mxu0 %v227
        %340 = vmatpush.msra.mxu0 %v226
        %341 = vmatpush.msra.mxu0 %v225
        %342 = vmatpush.msra.mxu0 %v224
        %343 = vmatmul.f32.gmra.mxu0 %v232
        %v344 = vpop.f32.mrf.mxu0
        %v345 = vadd.f32 %v229, %v344
        %346 = vmatmul.f32.gmra.mxu0 %v235
        %v347 = vpop.f32.mrf.mxu0
        %v348 = vadd.f32 %v229, %v347
        %349 = vmatmul.f32.gmra.mxu0 %v238
        %v350 = vpop.f32.mrf.mxu0
        %v351 = vadd.f32 %v229, %v350
        %352 = vmatmul.f32.gmra.mxu0 %v241
        %v353 = vpop.f32.mrf.mxu0
        %v354 = vadd.f32 %v229, %v353
        %355 = vmatmul.f32.gmra.mxu0 %v244
        %v356 = vpop.f32.mrf.mxu0
        %v357 = vadd.f32 %v229, %v356
        %358 = vmatmul.f32.gmra.mxu0 %v247
        %v359 = vpop.f32.mrf.mxu0
        %v360 = vadd.f32 %v229, %v359
        %361 = vmatmul.f32.gmra.mxu0 %v250
        %v362 = vpop.f32.mrf.mxu0
        %v363 = vadd.f32 %v229, %v362
        %364 = vmatmul.f32.gmra.mxu0 %v253
        %v365 = vpop.f32.mrf.mxu0
        %v366 = vadd.f32 %v229, %v365
        %367 = vmatmul.f32.gmra.mxu0 %v256
        %v368 = vpop.f32.mrf.mxu0
        %v369 = vadd.f32 %v229, %v368
        %370 = vmatmul.f32.gmra.mxu0 %v259
        %v371 = vpop.f32.mrf.mxu0
        %v372 = vadd.f32 %v229, %v371
        %373 = vmatmul.f32.gmra.mxu0 %v262
        %v374 = vpop.f32.mrf.mxu0
        %v375 = vadd.f32 %v229, %v374
        %376 = vmatmul.f32.gmra.mxu0 %v265
        %v377 = vpop.f32.mrf.mxu0
        %v378 = vadd.f32 %v229, %v377
        %379 = vmatmul.f32.gmra.mxu0 %v268
        %v380 = vpop.f32.mrf.mxu0
        %v381 = vadd.f32 %v229, %v380
        %382 = vmatmul.f32.gmra.mxu0 %v271
        %v383 = vpop.f32.mrf.mxu0
        %v384 = vadd.f32 %v229, %v383
        %385 = vmatmul.f32.gmra.mxu0 %v274
        %v386 = vpop.f32.mrf.mxu0
        %v387 = vadd.f32 %v229, %v386
        %388 = vmatmul.f32.gmra.mxu0 %v277
        %v389 = vpop.f32.mrf.mxu0
        %v390 = vadd.f32 %v229, %v389
        %391 = vmatmul.f32.gmra.mxu0 %v280
        %v392 = vpop.f32.mrf.mxu0
        %v393 = vadd.f32 %v229, %v392
        %394 = vmatmul.f32.gmra.mxu0 %v283
        %v395 = vpop.f32.mrf.mxu0
        %v396 = vadd.f32 %v229, %v395
        %397 = vmatmul.f32.gmra.mxu0 %v286
        %v398 = vpop.f32.mrf.mxu0
        %v399 = vadd.f32 %v229, %v398
        %400 = vmatmul.f32.gmra.mxu0 %v289
        %v401 = vpop.f32.mrf.mxu0
        %v402 = vadd.f32 %v229, %v401
        %403 = vmatmul.f32.gmra.mxu0 %v292
        %v404 = vpop.f32.mrf.mxu0
        %v405 = vadd.f32 %v229, %v404
        %406 = vmatmul.f32.gmra.mxu0 %v295
        %v407 = vpop.f32.mrf.mxu0
        %v408 = vadd.f32 %v229, %v407
        %409 = vmatmul.f32.gmra.mxu0 %v298
        %v410 = vpop.f32.mrf.mxu0
        %v411 = vadd.f32 %v229, %v410
        %412 = vmatmul.f32.gmra.mxu0 %v301
        %v413 = vpop.f32.mrf.mxu0
        %v414 = vadd.f32 %v229, %v413
        %415 = vmatmul.f32.gmra.mxu0 %v304
        %v416 = vpop.f32.mrf.mxu0
        %v417 = vadd.f32 %v229, %v416
        %418 = vmatmul.f32.gmra.mxu0 %v307
        %v419 = vpop.f32.mrf.mxu0
        %v420 = vadd.f32 %v229, %v419
        %421 = vmatmul.f32.gmra.mxu0 %v310
        %v422 = vpop.f32.mrf.mxu0
        %v423 = vadd.f32 %v229, %v422
        %424 = vmatmul.f32.gmra.mxu0 %v313
        %v425 = vpop.f32.mrf.mxu0
        %v426 = vadd.f32 %v229, %v425
        %427 = vmatmul.f32.gmra.mxu0 %v316
        %v428 = vpop.f32.mrf.mxu0
        %v429 = vadd.f32 %v229, %v428
        %430 = vmatmul.f32.gmra.mxu0 %v319
        %v431 = vpop.f32.mrf.mxu0
        %v432 = vadd.f32 %v229, %v431
        %433 = vmatmul.f32.gmra.mxu0 %v322
        %v434 = vpop.f32.mrf.mxu0
        %v435 = vadd.f32 %v229, %v434
        %436 = vmatmul.f32.gmra.mxu0 %v325
        %v437 = vpop.f32.mrf.mxu0
        %v438 = vadd.f32 %v229, %v437
        %439 = vdwg.mxu0
        %v440 = vmax.f32 %v345, 0.0
        %v441 = vmax.f32 %v348, 0.0
        %v442 = vmax.f32 %v351, 0.0
        %v443 = vmax.f32 %v354, 0.0
        %v444 = vmax.f32 %v357, 0.0
        %v445 = vmax.f32 %v360, 0.0
        %v446 = vmax.f32 %v363, 0.0
        %v447 = vmax.f32 %v366, 0.0
        %v448 = vmax.f32 %v369, 0.0
        %v449 = vmax.f32 %v372, 0.0
        %v450 = vmax.f32 %v375, 0.0
        %v451 = vmax.f32 %v378, 0.0
        %v452 = vmax.f32 %v381, 0.0
        %v453 = vmax.f32 %v384, 0.0
        %v454 = vmax.f32 %v387, 0.0
        %v455 = vmax.f32 %v390, 0.0
        %v456 = vmax.f32 %v393, 0.0
        %v457 = vmax.f32 %v396, 0.0
        %v458 = vmax.f32 %v399, 0.0
        %v459 = vmax.f32 %v402, 0.0
        %v460 = vmax.f32 %v405, 0.0
        %v461 = vmax.f32 %v408, 0.0
        %v462 = vmax.f32 %v411, 0.0
        %v463 = vmax.f32 %v414, 0.0
        %v464 = vmax.f32 %v417, 0.0
        %v465 = vmax.f32 %v420, 0.0
        %v466 = vmax.f32 %v423, 0.0
        %v467 = vmax.f32 %v426, 0.0
        %v468 = vmax.f32 %v429, 0.0
        %v469 = vmax.f32 %v432, 0.0
        %v470 = vmax.f32 %v435, 0.0
        %v471 = vmax.f32 %v438, 0.0
        %v472 = vld [vmem:[%s1 + $0x20] sm:$0xff]
        %v473 = vld [vmem:[%s1 + $0x28] sm:$0xff]
        %v474 = vld [vmem:[%s1 + $0x30] sm:$0xff]
        %v475 = vld [vmem:[%s1 + $0x38] sm:$0xff]
        %v476 = vld [vmem:[%s1 + $0x40] sm:$0xff]
        %v477 = vld [vmem:[%s1 + $0x48] sm:$0xff]
        %v478 = vld [vmem:[%s1 + $0x50] sm:$0xff]
        %v479 = vld [vmem:[%s1 + $0x58] sm:$0xff]
        %v480 = vld [vmem:[%s1 + $0x60] sm:$0xff]
        %v481 = vld [vmem:[%s1 + $0x68] sm:$0xff]
        %v482 = vld [vmem:[%s1 + $0x70] sm:$0xff]
        %v483 = vld [vmem:[%s1 + $0x78] sm:$0xff]
        %v484 = vld [vmem:[%s1 + $0x80] sm:$0xff]
        %v485 = vld [vmem:[%s1 + $0x88] sm:$0xff]
        %v486 = vld [vmem:[%s1 + $0x90] sm:$0xff]
        %v487 = vld [vmem:[%s1 + $0x98] sm:$0xff]
        %v488 = vld [vmem:[%s2 + $0x1] sm:$0x1]
        %v489 = vperm.slane %v488, 0
        %490 = vmatpush.msra.mxu0 %v487
        %491 = vmatpush.msra.mxu0 %v486
        %492 = vmatpush.msra.mxu0 %v485
        %493 = vmatpush.msra.mxu0 %v484
        %494 = vmatpush.msra.mxu0 %v483
        %495 = vmatpush.msra.mxu0 %v482
        %496 = vmatpush.msra.mxu0 %v481
        %497 = vmatpush.msra.mxu0 %v480
        %498 = vmatpush.msra.mxu0 %v479
        %499 = vmatpush.msra.mxu0 %v478
        %500 = vmatpush.msra.mxu0 %v477
        %501 = vmatpush.msra.mxu0 %v476
        %502 = vmatpush.msra.mxu0 %v475
        %503 = vmatpush.msra.mxu0 %v474
        %504 = vmatpush.msra.mxu0 %v473
        %505 = vmatpush.msra.mxu0 %v472
        %506 = vmatmul.f32.gmra.mxu0 %v440
        %v507 = vpop.f32.mrf.mxu0
        %v508 = vadd.f32 %v489, %v507
        %509 = vmatmul.f32.gmra.mxu0 %v441
        %v510 = vpop.f32.mrf.mxu0
        %v511 = vadd.f32 %v489, %v510
        %512 = vmatmul.f32.gmra.mxu0 %v442
        %v513 = vpop.f32.mrf.mxu0
        %v514 = vadd.f32 %v489, %v513
        %515 = vmatmul.f32.gmra.mxu0 %v443
        %v516 = vpop.f32.mrf.mxu0
        %v517 = vadd.f32 %v489, %v516
        %518 = vmatmul.f32.gmra.mxu0 %v444
        %v519 = vpop.f32.mrf.mxu0
        %v520 = vadd.f32 %v489, %v519
        %521 = vmatmul.f32.gmra.mxu0 %v445
        %v522 = vpop.f32.mrf.mxu0
        %v523 = vadd.f32 %v489, %v522
        %524 = vmatmul.f32.gmra.mxu0 %v446
        %v525 = vpop.f32.mrf.mxu0
        %v526 = vadd.f32 %v489, %v525
        %527 = vmatmul.f32.gmra.mxu0 %v447
        %v528 = vpop.f32.mrf.mxu0
        %v529 = vadd.f32 %v489, %v528
        %530 = vmatmul.f32.gmra.mxu0 %v448
        %v531 = vpop.f32.mrf.mxu0
        %v532 = vadd.f32 %v489, %v531
        %533 = vmatmul.f32.gmra.mxu0 %v449
        %v534 = vpop.f32.mrf.mxu0
        %v535 = vadd.f32 %v489, %v534
        %536 = vmatmul.f32.gmra.mxu0 %v450
        %v537 = vpop.f32.mrf.mxu0
        %v538 = vadd.f32 %v489, %v537
        %539 = vmatmul.f32.gmra.mxu0 %v451
        %v540 = vpop.f32.mrf.mxu0
        %v541 = vadd.f32 %v489, %v540
        %542 = vmatmul.f32.gmra.mxu0 %v452
        %v543 = vpop.f32.mrf.mxu0
        %v544 = vadd.f32 %v489, %v543
        %545 = vmatmul.f32.gmra.mxu0 %v453
        %v546 = vpop.f32.mrf.mxu0
        %v547 = vadd.f32 %v489, %v546
        %548 = vmatmul.f32.gmra.mxu0 %v454
        %v549 = vpop.f32.mrf.mxu0
        %v550 = vadd.f32 %v489, %v549
        %551 = vmatmul.f32.gmra.mxu0 %v455
        %v552 = vpop.f32.mrf.mxu0
        %v553 = vadd.f32 %v489, %v552
        %554 = vmatmul.f32.gmra.mxu0 %v456
        %v555 = vpop.f32.mrf.mxu0
        %v556 = vadd.f32 %v489, %v555
        %557 = vmatmul.f32.gmra.mxu0 %v457
        %v558 = vpop.f32.mrf.mxu0
        %v559 = vadd.f32 %v489, %v558
        %560 = vmatmul.f32.gmra.mxu0 %v458
        %v561 = vpop.f32.mrf.mxu0
        %v562 = vadd.f32 %v489, %v561
        %563 = vmatmul.f32.gmra.mxu0 %v459
        %v564 = vpop.f32.mrf.mxu0
        %v565 = vadd.f32 %v489, %v564
        %566 = vmatmul.f32.gmra.mxu0 %v460
        %v567 = vpop.f32.mrf.mxu0
        %v568 = vadd.f32 %v489, %v567
        %569 = vmatmul.f32.gmra.mxu0 %v461
        %v570 = vpop.f32.mrf.mxu0
        %v571 = vadd.f32 %v489, %v570
        %572 = vmatmul.f32.gmra.mxu0 %v462
        %v573 = vpop.f32.mrf.mxu0
        %v574 = vadd.f32 %v489, %v573
        %575 = vmatmul.f32.gmra.mxu0 %v463
        %v576 = vpop.f32.mrf.mxu0
        %v577 = vadd.f32 %v489, %v576
        %578 = vmatmul.f32.gmra.mxu0 %v464
        %v579 = vpop.f32.mrf.mxu0
        %v580 = vadd.f32 %v489, %v579
        %581 = vmatmul.f32.gmra.mxu0 %v465
        %v582 = vpop.f32.mrf.mxu0
        %v583 = vadd.f32 %v489, %v582
        %584 = vmatmul.f32.gmra.mxu0 %v466
        %v585 = vpop.f32.mrf.mxu0
        %v586 = vadd.f32 %v489, %v585
        %587 = vmatmul.f32.gmra.mxu0 %v467
        %v588 = vpop.f32.mrf.mxu0
        %v589 = vadd.f32 %v489, %v588
        %590 = vmatmul.f32.gmra.mxu0 %v468
        %v591 = vpop.f32.mrf.mxu0
        %v592 = vadd.f32 %v489, %v591
        %593 = vmatmul.f32.gmra.mxu0 %v469
        %v594 = vpop.f32.mrf.mxu0
        %v595 = vadd.f32 %v489, %v594
        %596 = vmatmul.f32.gmra.mxu0 %v470
        %v597 = vpop.f32.mrf.mxu0
        %v598 = vadd.f32 %v489, %v597
        %599 = vmatmul.f32.gmra.mxu0 %v471
        %v600 = vpop.f32.mrf.mxu0
        %v601 = vadd.f32 %v489, %v600
        %602 = vdwg.mxu0
        %v603 = vmax.f32 %v508, 0.0
        %v604 = vmax.f32 %v511, 0.0
        %v605 = vmax.f32 %v514, 0.0
        %v606 = vmax.f32 %v517, 0.0
        %v607 = vmax.f32 %v520, 0.0
        %v608 = vmax.f32 %v523, 0.0
        %v609 = vmax.f32 %v526, 0.0
        %v610 = vmax.f32 %v529, 0.0
        %v611 = vmax.f32 %v532, 0.0
        %v612 = vmax.f32 %v535, 0.0
        %v613 = vmax.f32 %v538, 0.0
        %v614 = vmax.f32 %v541, 0.0
        %v615 = vmax.f32 %v544, 0.0
        %v616 = vmax.f32 %v547, 0.0
        %v617 = vmax.f32 %v550, 0.0
        %v618 = vmax.f32 %v553, 0.0
        %v619 = vmax.f32 %v556, 0.0
        %v620 = vmax.f32 %v559, 0.0
        %v621 = vmax.f32 %v562, 0.0
        %v622 = vmax.f32 %v565, 0.0
        %v623 = vmax.f32 %v568, 0.0
        %v624 = vmax.f32 %v571, 0.0
        %v625 = vmax.f32 %v574, 0.0
        %v626 = vmax.f32 %v577, 0.0
        %v627 = vmax.f32 %v580, 0.0
        %v628 = vmax.f32 %v583, 0.0
        %v629 = vmax.f32 %v586, 0.0
        %v630 = vmax.f32 %v589, 0.0
        %v631 = vmax.f32 %v592, 0.0
        %v632 = vmax.f32 %v595, 0.0
        %v633 = vmax.f32 %v598, 0.0
        %v634 = vmax.f32 %v601, 0.0
        %v635 = vld [vmem:[%s1 + $0xa0] sm:$0xff]
        %v636 = vld [vmem:[%s1 + $0xa8] sm:$0xff]
        %v637 = vld [vmem:[%s1 + $0xb0] sm:$0xff]
        %v638 = vld [vmem:[%s1 + $0xb8] sm:$0xff]
        %v639 = vld [vmem:[%s1 + $0xc0] sm:$0xff]
        %v640 = vld [vmem:[%s1 + $0xc8] sm:$0xff]
        %v641 = vld [vmem:[%s1 + $0xd0] sm:$0xff]
        %v642 = vld [vmem:[%s1 + $0xd8] sm:$0xff]
        %v643 = vld [vmem:[%s1 + $0xe0] sm:$0xff]
        %v644 = vld [vmem:[%s1 + $0xe8] sm:$0xff]
        %v645 = vld [vmem:[%s1 + $0xf0] sm:$0xff]
        %v646 = vld [vmem:[%s1 + $0xf8] sm:$0xff]
        %v647 = vld [vmem:[%s1 + $0x100] sm:$0xff]
        %v648 = vld [vmem:[%s1 + $0x108] sm:$0xff]
        %v649 = vld [vmem:[%s1 + $0x110] sm:$0xff]
        %v650 = vld [vmem:[%s1 + $0x118] sm:$0xff]
        %v651 = vld [vmem:[%s1 + $0x120] sm:$0xff]
        %v652 = vld [vmem:[%s1 + $0x128] sm:$0xff]
        %v653 = vld [vmem:[%s1 + $0x130] sm:$0xff]
        %v654 = vld [vmem:[%s1 + $0x138] sm:$0xff]
        %655 = vmatpush.msra.mxu0 %v654
        %656 = vmatpush.msra.mxu0 %v653
        %657 = vmatpush.msra.mxu0 %v652
        %658 = vmatpush.msra.mxu0 %v651
        %659 = vmatpush.msra.mxu0 %v650
        %660 = vmatpush.msra.mxu0 %v649
        %661 = vmatpush.msra.mxu0 %v648
        %662 = vmatpush.msra.mxu0 %v647
        %663 = vmatpush.msra.mxu0 %v646
        %664 = vmatpush.msra.mxu0 %v645
        %665 = vmatpush.msra.mxu0 %v644
        %666 = vmatpush.msra.mxu0 %v643
        %667 = vmatpush.msra.mxu0 %v642
        %668 = vmatpush.msra.mxu0 %v641
        %669 = vmatpush.msra.mxu0 %v640
        %670 = vmatpush.msra.mxu0 %v639
        %671 = vmatmul.f32.gmra.mxu0 %v603
        %v672 = vpop.f32.mrf.mxu0
        %v673 = vadd.f32 0.0, %v672
        %674 = vmatmul.f32.gmra.mxu0 %v604
        %v675 = vpop.f32.mrf.mxu0
        %v676 = vadd.f32 0.0, %v675
        %677 = vmatmul.f32.gmra.mxu0 %v605
        %v678 = vpop.f32.mrf.mxu0
        %v679 = vadd.f32 0.0, %v678
        %680 = vmatmul.f32.gmra.mxu0 %v606
        %v681 = vpop.f32.mrf.mxu0
        %v682 = vadd.f32 0.0, %v681
        %683 = vmatmul.f32.gmra.mxu0 %v607
        %v684 = vpop.f32.mrf.mxu0
        %v685 = vadd.f32 0.0, %v684
        %686 = vmatmul.f32.gmra.mxu0 %v608
        %v687 = vpop.f32.mrf.mxu0
        %v688 = vadd.f32 0.0, %v687
        %689 = vmatmul.f32.gmra.mxu0 %v609
        %v690 = vpop.f32.mrf.mxu0
        %v691 = vadd.f32 0.0, %v690
        %692 = vmatmul.f32.gmra.mxu0 %v610
        %v693 = vpop.f32.mrf.mxu0
        %v694 = vadd.f32 0.0, %v693
        %695 = vmatmul.f32.gmra.mxu0 %v611
        %v696 = vpop.f32.mrf.mxu0
        %v697 = vadd.f32 0.0, %v696
        %698 = vmatmul.f32.gmra.mxu0 %v612
        %v699 = vpop.f32.mrf.mxu0
        %v700 = vadd.f32 0.0, %v699
        %701 = vmatmul.f32.gmra.mxu0 %v613
        %v702 = vpop.f32.mrf.mxu0
        %v703 = vadd.f32 0.0, %v702
        %704 = vmatmul.f32.gmra.mxu0 %v614
        %v705 = vpop.f32.mrf.mxu0
        %v706 = vadd.f32 0.0, %v705
        %707 = vmatmul.f32.gmra.mxu0 %v615
        %v708 = vpop.f32.mrf.mxu0
        %v709 = vadd.f32 0.0, %v708
        %710 = vmatmul.f32.gmra.mxu0 %v616
        %v711 = vpop.f32.mrf.mxu0
        %v712 = vadd.f32 0.0, %v711
        %713 = vmatmul.f32.gmra.mxu0 %v617
        %v714 = vpop.f32.mrf.mxu0
        %v715 = vadd.f32 0.0, %v714
        %716 = vmatmul.f32.gmra.mxu0 %v618
        %v717 = vpop.f32.mrf.mxu0
        %v718 = vadd.f32 0.0, %v717
        %719 = vmatmul.f32.gmra.mxu0 %v619
        %v720 = vpop.f32.mrf.mxu0
        %v721 = vadd.f32 0.0, %v720
        %722 = vmatmul.f32.gmra.mxu0 %v620
        %v723 = vpop.f32.mrf.mxu0
        %v724 = vadd.f32 0.0, %v723
        %725 = vmatmul.f32.gmra.mxu0 %v621
        %v726 = vpop.f32.mrf.mxu0
        %v727 = vadd.f32 0.0, %v726
        %728 = vmatmul.f32.gmra.mxu0 %v622
        %v729 = vpop.f32.mrf.mxu0
        %v730 = vadd.f32 0.0, %v729
        %731 = vmatmul.f32.gmra.mxu0 %v623
        %v732 = vpop.f32.mrf.mxu0
        %v733 = vadd.f32 0.0, %v732
        %734 = vmatmul.f32.gmra.mxu0 %v624
        %v735 = vpop.f32.mrf.mxu0
        %v736 = vadd.f32 0.0, %v735
        %737 = vmatmul.f32.gmra.mxu0 %v625
        %v738 = vpop.f32.mrf.mxu0
        %v739 = vadd.f32 0.0, %v738
        %740 = vmatmul.f32.gmra.mxu0 %v626
        %v741 = vpop.f32.mrf.mxu0
        %v742 = vadd.f32 0.0, %v741
        %743 = vmatmul.f32.gmra.mxu0 %v627
        %v744 = vpop.f32.mrf.mxu0
        %v745 = vadd.f32 0.0, %v744
        %746 = vmatmul.f32.gmra.mxu0 %v628
        %v747 = vpop.f32.mrf.mxu0
        %v748 = vadd.f32 0.0, %v747
        %749 = vmatmul.f32.gmra.mxu0 %v629
        %v750 = vpop.f32.mrf.mxu0
        %v751 = vadd.f32 0.0, %v750
        %752 = vmatmul.f32.gmra.mxu0 %v630
        %v753 = vpop.f32.mrf.mxu0
        %v754 = vadd.f32 0.0, %v753
        %755 = vmatmul.f32.gmra.mxu0 %v631
        %v756 = vpop.f32.mrf.mxu0
        %v757 = vadd.f32 0.0, %v756
        %758 = vmatmul.f32.gmra.mxu0 %v632
        %v759 = vpop.f32.mrf.mxu0
        %v760 = vadd.f32 0.0, %v759
        %761 = vmatmul.f32.gmra.mxu0 %v633
        %v762 = vpop.f32.mrf.mxu0
        %v763 = vadd.f32 0.0, %v762
        %764 = vmatmul.f32.gmra.mxu0 %v634
        %v765 = vpop.f32.mrf.mxu0
        %v766 = vadd.f32 0.0, %v765
        %767 = vdwg.mxu0
        %768 = vmatpush.msra.mxu0 0.0
        %769 = vmatpush.msra.mxu0 0.0
        %770 = vmatpush.msra.mxu0 0.0
        %771 = vmatpush.msra.mxu0 0.0
        %772 = vmatpush.msra.mxu0 0.0
        %773 = vmatpush.msra.mxu0 0.0
        %774 = vmatpush.msra.mxu0 0.0
        %775 = vmatpush.msra.mxu0 0.0
        %776 = vmatpush.msra.mxu0 0.0
        %777 = vmatpush.msra.mxu0 0.0
        %778 = vmatpush.msra.mxu0 0.0
        %779 = vmatpush.msra.mxu0 0.0
        %780 = vmatpush.msra.mxu0 %v638
        %781 = vmatpush.msra.mxu0 %v637
        %782 = vmatpush.msra.mxu0 %v636
        %783 = vmatpush.msra.mxu0 %v635
        %784 = vmatmul.f32.gmra.mxu0 %v232
        %v785 = vpop.f32.mrf.mxu0
        %v786 = vadd.f32 %v673, %v785
        %787 = vmatmul.f32.gmra.mxu0 %v235
        %v788 = vpop.f32.mrf.mxu0
        %v789 = vadd.f32 %v676, %v788
        %790 = vmatmul.f32.gmra.mxu0 %v238
        %v791 = vpop.f32.mrf.mxu0
        %v792 = vadd.f32 %v679, %v791
        %793 = vmatmul.f32.gmra.mxu0 %v241
        %v794 = vpop.f32.mrf.mxu0
        %v795 = vadd.f32 %v682, %v794
        %796 = vmatmul.f32.gmra.mxu0 %v244
        %v797 = vpop.f32.mrf.mxu0
        %v798 = vadd.f32 %v685, %v797
        %799 = vmatmul.f32.gmra.mxu0 %v247
        %v800 = vpop.f32.mrf.mxu0
        %v801 = vadd.f32 %v688, %v800
        %802 = vmatmul.f32.gmra.mxu0 %v250
        %v803 = vpop.f32.mrf.mxu0
        %v804 = vadd.f32 %v691, %v803
        %805 = vmatmul.f32.gmra.mxu0 %v253
        %v806 = vpop.f32.mrf.mxu0
        %v807 = vadd.f32 %v694, %v806
        %808 = vmatmul.f32.gmra.mxu0 %v256
        %v809 = vpop.f32.mrf.mxu0
        %v810 = vadd.f32 %v697, %v809
        %811 = vmatmul.f32.gmra.mxu0 %v259
        %v812 = vpop.f32.mrf.mxu0
        %v813 = vadd.f32 %v700, %v812
        %814 = vmatmul.f32.gmra.mxu0 %v262
        %v815 = vpop.f32.mrf.mxu0
        %v816 = vadd.f32 %v703, %v815
        %817 = vmatmul.f32.gmra.mxu0 %v265
        %v818 = vpop.f32.mrf.mxu0
        %v819 = vadd.f32 %v706, %v818
        %820 = vmatmul.f32.gmra.mxu0 %v268
        %v821 = vpop.f32.mrf.mxu0
        %v822 = vadd.f32 %v709, %v821
        %823 = vmatmul.f32.gmra.mxu0 %v271
        %v824 = vpop.f32.mrf.mxu0
        %v825 = vadd.f32 %v712, %v824
        %826 = vmatmul.f32.gmra.mxu0 %v274
        %v827 = vpop.f32.mrf.mxu0
        %v828 = vadd.f32 %v715, %v827
        %829 = vmatmul.f32.gmra.mxu0 %v277
        %v830 = vpop.f32.mrf.mxu0
        %v831 = vadd.f32 %v718, %v830
        %832 = vmatmul.f32.gmra.mxu0 %v280
        %v833 = vpop.f32.mrf.mxu0
        %v834 = vadd.f32 %v721, %v833
        %835 = vmatmul.f32.gmra.mxu0 %v283
        %v836 = vpop.f32.mrf.mxu0
        %v837 = vadd.f32 %v724, %v836
        %838 = vmatmul.f32.gmra.mxu0 %v286
        %v839 = vpop.f32.mrf.mxu0
        %v840 = vadd.f32 %v727, %v839
        %841 = vmatmul.f32.gmra.mxu0 %v289
        %v842 = vpop.f32.mrf.mxu0
        %v843 = vadd.f32 %v730, %v842
        %844 = vmatmul.f32.gmra.mxu0 %v292
        %v845 = vpop.f32.mrf.mxu0
        %v846 = vadd.f32 %v733, %v845
        %847 = vmatmul.f32.gmra.mxu0 %v295
        %v848 = vpop.f32.mrf.mxu0
        %v849 = vadd.f32 %v736, %v848
        %850 = vmatmul.f32.gmra.mxu0 %v298
        %v851 = vpop.f32.mrf.mxu0
        %v852 = vadd.f32 %v739, %v851
        %853 = vmatmul.f32.gmra.mxu0 %v301
        %v854 = vpop.f32.mrf.mxu0
        %v855 = vadd.f32 %v742, %v854
        %856 = vmatmul.f32.gmra.mxu0 %v304
        %v857 = vpop.f32.mrf.mxu0
        %v858 = vadd.f32 %v745, %v857
        %859 = vmatmul.f32.gmra.mxu0 %v307
        %v860 = vpop.f32.mrf.mxu0
        %v861 = vadd.f32 %v748, %v860
        %862 = vmatmul.f32.gmra.mxu0 %v310
        %v863 = vpop.f32.mrf.mxu0
        %v864 = vadd.f32 %v751, %v863
        %865 = vmatmul.f32.gmra.mxu0 %v313
        %v866 = vpop.f32.mrf.mxu0
        %v867 = vadd.f32 %v754, %v866
        %868 = vmatmul.f32.gmra.mxu0 %v316
        %v869 = vpop.f32.mrf.mxu0
        %v870 = vadd.f32 %v757, %v869
        %871 = vmatmul.f32.gmra.mxu0 %v319
        %v872 = vpop.f32.mrf.mxu0
        %v873 = vadd.f32 %v760, %v872
        %874 = vmatmul.f32.gmra.mxu0 %v322
        %v875 = vpop.f32.mrf.mxu0
        %v876 = vadd.f32 %v763, %v875
        %877 = vmatmul.f32.gmra.mxu0 %v325
        %v878 = vpop.f32.mrf.mxu0
        %v879 = vadd.f32 %v766, %v878
        %880 = vdwg.mxu0
        %v881 = vld [vmem:[%s2 + $0x2] sm:$0x1]
        %v882 = vperm.slane %v881, 0
        %v883 = vadd.f32 %v786, %v882
        %v884 = vadd.f32 %v789, %v882
        %v885 = vadd.f32 %v792, %v882
        %v886 = vadd.f32 %v795, %v882
        %v887 = vadd.f32 %v798, %v882
        %v888 = vadd.f32 %v801, %v882
        %v889 = vadd.f32 %v804, %v882
        %v890 = vadd.f32 %v807, %v882
        %v891 = vadd.f32 %v810, %v882
        %v892 = vadd.f32 %v813, %v882
        %v893 = vadd.f32 %v816, %v882
        %v894 = vadd.f32 %v819, %v882
        %v895 = vadd.f32 %v822, %v882
        %v896 = vadd.f32 %v825, %v882
        %v897 = vadd.f32 %v828, %v882
        %v898 = vadd.f32 %v831, %v882
        %v899 = vadd.f32 %v834, %v882
        %v900 = vadd.f32 %v837, %v882
        %v901 = vadd.f32 %v840, %v882
        %v902 = vadd.f32 %v843, %v882
        %v903 = vadd.f32 %v846, %v882
        %v904 = vadd.f32 %v849, %v882
        %v905 = vadd.f32 %v852, %v882
        %v906 = vadd.f32 %v855, %v882
        %v907 = vadd.f32 %v858, %v882
        %v908 = vadd.f32 %v861, %v882
        %v909 = vadd.f32 %v864, %v882
        %v910 = vadd.f32 %v867, %v882
        %v911 = vadd.f32 %v870, %v882
        %v912 = vadd.f32 %v873, %v882
        %v913 = vadd.f32 %v876, %v882
        %v914 = vadd.f32 %v879, %v882
        %v915 = vmax.f32 %v883, 0.0
        %v916 = vmax.f32 %v884, 0.0
        %v917 = vmax.f32 %v885, 0.0
        %v918 = vmax.f32 %v886, 0.0
        %v919 = vmax.f32 %v887, 0.0
        %v920 = vmax.f32 %v888, 0.0
        %v921 = vmax.f32 %v889, 0.0
        %v922 = vmax.f32 %v890, 0.0
        %v923 = vmax.f32 %v891, 0.0
        %v924 = vmax.f32 %v892, 0.0
        %v925 = vmax.f32 %v893, 0.0
        %v926 = vmax.f32 %v894, 0.0
        %v927 = vmax.f32 %v895, 0.0
        %v928 = vmax.f32 %v896, 0.0
        %v929 = vmax.f32 %v897, 0.0
        %v930 = vmax.f32 %v898, 0.0
        %v931 = vmax.f32 %v899, 0.0
        %v932 = vmax.f32 %v900, 0.0
        %v933 = vmax.f32 %v901, 0.0
        %v934 = vmax.f32 %v902, 0.0
        %v935 = vmax.f32 %v903, 0.0
        %v936 = vmax.f32 %v904, 0.0
        %v937 = vmax.f32 %v905, 0.0
        %v938 = vmax.f32 %v906, 0.0
        %v939 = vmax.f32 %v907, 0.0
        %v940 = vmax.f32 %v908, 0.0
        %v941 = vmax.f32 %v909, 0.0
        %v942 = vmax.f32 %v910, 0.0
        %v943 = vmax.f32 %v911, 0.0
        %v944 = vmax.f32 %v912, 0.0
        %v945 = vmax.f32 %v913, 0.0
        %v946 = vmax.f32 %v914, 0.0
        %v947 = vld [vmem:[%s1 + $0x140] sm:$0xff]
        %v948 = vld [vmem:[%s1 + $0x148] sm:$0xff]
        %v949 = vld [vmem:[%s1 + $0x150] sm:$0xff]
        %v950 = vld [vmem:[%s1 + $0x158] sm:$0xff]
        %v951 = vld [vmem:[%s1 + $0x160] sm:$0xff]
        %v952 = vld [vmem:[%s1 + $0x168] sm:$0xff]
        %v953 = vld [vmem:[%s1 + $0x170] sm:$0xff]
        %v954 = vld [vmem:[%s1 + $0x178] sm:$0xff]
        %v955 = vld [vmem:[%s1 + $0x180] sm:$0xff]
        %v956 = vld [vmem:[%s1 + $0x188] sm:$0xff]
        %v957 = vld [vmem:[%s1 + $0x190] sm:$0xff]
        %v958 = vld [vmem:[%s1 + $0x198] sm:$0xff]
        %v959 = vld [vmem:[%s1 + $0x1a0] sm:$0xff]
        %v960 = vld [vmem:[%s1 + $0x1a8] sm:$0xff]
        %v961 = vld [vmem:[%s1 + $0x1b0] sm:$0xff]
        %v962 = vld [vmem:[%s1 + $0x1b8] sm:$0xff]
        %v963 = vld [vmem:[%s2 + $0x3] sm:$0x1]
        %v964 = vperm.slane %v963, 0
        %965 = vmatpush.msra.mxu0 %v962
        %966 = vmatpush.msra.mxu0 %v961
        %967 = vmatpush.msra.mxu0 %v960
        %968 = vmatpush.msra.mxu0 %v959
        %969 = vmatpush.msra.mxu0 %v958
        %970 = vmatpush.msra.mxu0 %v957
        %971 = vmatpush.msra.mxu0 %v956
        %972 = vmatpush.msra.mxu0 %v955
        %973 = vmatpush.msra.mxu0 %v954
        %974 = vmatpush.msra.mxu0 %v953
        %975 = vmatpush.msra.mxu0 %v952
        %976 = vmatpush.msra.mxu0 %v951
        %977 = vmatpush.msra.mxu0 %v950
        %978 = vmatpush.msra.mxu0 %v949
        %979 = vmatpush.msra.mxu0 %v948
        %980 = vmatpush.msra.mxu0 %v947
        %981 = vmatmul.f32.gmra.mxu0 %v915
        %v982 = vpop.f32.mrf.mxu0
        %v983 = vadd.f32 %v964, %v982
        %984 = vmatmul.f32.gmra.mxu0 %v916
        %v985 = vpop.f32.mrf.mxu0
        %v986 = vadd.f32 %v964, %v985
        %987 = vmatmul.f32.gmra.mxu0 %v917
        %v988 = vpop.f32.mrf.mxu0
        %v989 = vadd.f32 %v964, %v988
        %990 = vmatmul.f32.gmra.mxu0 %v918
        %v991 = vpop.f32.mrf.mxu0
        %v992 = vadd.f32 %v964, %v991
        %993 = vmatmul.f32.gmra.mxu0 %v919
        %v994 = vpop.f32.mrf.mxu0
        %v995 = vadd.f32 %v964, %v994
        %996 = vmatmul.f32.gmra.mxu0 %v920
        %v997 = vpop.f32.mrf.mxu0
        %v998 = vadd.f32 %v964, %v997
        %999 = vmatmul.f32.gmra.mxu0 %v921
        %v1000 = vpop.f32.mrf.mxu0
        %v1001 = vadd.f32 %v964, %v1000
        %1002 = vmatmul.f32.gmra.mxu0 %v922
        %v1003 = vpop.f32.mrf.mxu0
        %v1004 = vadd.f32 %v964, %v1003
        %1005 = vmatmul.f32.gmra.mxu0 %v923
        %v1006 = vpop.f32.mrf.mxu0
        %v1007 = vadd.f32 %v964, %v1006
        %1008 = vmatmul.f32.gmra.mxu0 %v924
        %v1009 = vpop.f32.mrf.mxu0
        %v1010 = vadd.f32 %v964, %v1009
        %1011 = vmatmul.f32.gmra.mxu0 %v925
        %v1012 = vpop.f32.mrf.mxu0
        %v1013 = vadd.f32 %v964, %v1012
        %1014 = vmatmul.f32.gmra.mxu0 %v926
        %v1015 = vpop.f32.mrf.mxu0
        %v1016 = vadd.f32 %v964, %v1015
        %1017 = vmatmul.f32.gmra.mxu0 %v927
        %v1018 = vpop.f32.mrf.mxu0
        %v1019 = vadd.f32 %v964, %v1018
        %1020 = vmatmul.f32.gmra.mxu0 %v928
        %v1021 = vpop.f32.mrf.mxu0
        %v1022 = vadd.f32 %v964, %v1021
        %1023 = vmatmul.f32.gmra.mxu0 %v929
        %v1024 = vpop.f32.mrf.mxu0
        %v1025 = vadd.f32 %v964, %v1024
        %1026 = vmatmul.f32.gmra.mxu0 %v930
        %v1027 = vpop.f32.mrf.mxu0
        %v1028 = vadd.f32 %v964, %v1027
        %1029 = vmatmul.f32.gmra.mxu0 %v931
        %v1030 = vpop.f32.mrf.mxu0
        %v1031 = vadd.f32 %v964, %v1030
        %1032 = vmatmul.f32.gmra.mxu0 %v932
        %v1033 = vpop.f32.mrf.mxu0
        %v1034 = vadd.f32 %v964, %v1033
        %1035 = vmatmul.f32.gmra.mxu0 %v933
        %v1036 = vpop.f32.mrf.mxu0
        %v1037 = vadd.f32 %v964, %v1036
        %1038 = vmatmul.f32.gmra.mxu0 %v934
        %v1039 = vpop.f32.mrf.mxu0
        %v1040 = vadd.f32 %v964, %v1039
        %1041 = vmatmul.f32.gmra.mxu0 %v935
        %v1042 = vpop.f32.mrf.mxu0
        %v1043 = vadd.f32 %v964, %v1042
        %1044 = vmatmul.f32.gmra.mxu0 %v936
        %v1045 = vpop.f32.mrf.mxu0
        %v1046 = vadd.f32 %v964, %v1045
        %1047 = vmatmul.f32.gmra.mxu0 %v937
        %v1048 = vpop.f32.mrf.mxu0
        %v1049 = vadd.f32 %v964, %v1048
        %1050 = vmatmul.f32.gmra.mxu0 %v938
        %v1051 = vpop.f32.mrf.mxu0
        %v1052 = vadd.f32 %v964, %v1051
        %1053 = vmatmul.f32.gmra.mxu0 %v939
        %v1054 = vpop.f32.mrf.mxu0
        %v1055 = vadd.f32 %v964, %v1054
        %1056 = vmatmul.f32.gmra.mxu0 %v940
        %v1057 = vpop.f32.mrf.mxu0
        %v1058 = vadd.f32 %v964, %v1057
        %1059 = vmatmul.f32.gmra.mxu0 %v941
        %v1060 = vpop.f32.mrf.mxu0
        %v1061 = vadd.f32 %v964, %v1060
        %1062 = vmatmul.f32.gmra.mxu0 %v942
        %v1063 = vpop.f32.mrf.mxu0
        %v1064 = vadd.f32 %v964, %v1063
        %1065 = vmatmul.f32.gmra.mxu0 %v943
        %v1066 = vpop.f32.mrf.mxu0
        %v1067 = vadd.f32 %v964, %v1066
        %1068 = vmatmul.f32.gmra.mxu0 %v944
        %v1069 = vpop.f32.mrf.mxu0
        %v1070 = vadd.f32 %v964, %v1069
        %1071 = vmatmul.f32.gmra.mxu0 %v945
        %v1072 = vpop.f32.mrf.mxu0
        %v1073 = vadd.f32 %v964, %v1072
        %1074 = vmatmul.f32.gmra.mxu0 %v946
        %v1075 = vpop.f32.mrf.mxu0
        %v1076 = vadd.f32 %v964, %v1075
        %1077 = vdwg.mxu0
        %vm1078 = vcmask 523264
        %1079 = vst.msk [vmem:[%s172] sm:$0xff] %vm1078, %v983
        %1080 = vst.msk [vmem:[%s172 + $0x8] sm:$0xff] %vm1078, %v986
        %1081 = vst.msk [vmem:[%s172 + $0x10] sm:$0xff] %vm1078, %v989
        %1082 = vst.msk [vmem:[%s172 + $0x18] sm:$0xff] %vm1078, %v992
        %1083 = vst.msk [vmem:[%s172 + $0x20] sm:$0xff] %vm1078, %v995
        %1084 = vst.msk [vmem:[%s172 + $0x28] sm:$0xff] %vm1078, %v998
        %1085 = vst.msk [vmem:[%s172 + $0x30] sm:$0xff] %vm1078, %v1001
        %1086 = vst.msk [vmem:[%s172 + $0x38] sm:$0xff] %vm1078, %v1004
        %1087 = vst.msk [vmem:[%s172 + $0x40] sm:$0xff] %vm1078, %v1007
        %1088 = vst.msk [vmem:[%s172 + $0x48] sm:$0xff] %vm1078, %v1010
        %1089 = vst.msk [vmem:[%s172 + $0x50] sm:$0xff] %vm1078, %v1013
        %1090 = vst.msk [vmem:[%s172 + $0x58] sm:$0xff] %vm1078, %v1016
        %1091 = vst.msk [vmem:[%s172 + $0x60] sm:$0xff] %vm1078, %v1019
        %1092 = vst.msk [vmem:[%s172 + $0x68] sm:$0xff] %vm1078, %v1022
        %1093 = vst.msk [vmem:[%s172 + $0x70] sm:$0xff] %vm1078, %v1025
        %1094 = vst.msk [vmem:[%s172 + $0x78] sm:$0xff] %vm1078, %v1028
        %1095 = vst.msk [vmem:[%s172 + $0x80] sm:$0xff] %vm1078, %v1031
        %1096 = vst.msk [vmem:[%s172 + $0x88] sm:$0xff] %vm1078, %v1034
        %1097 = vst.msk [vmem:[%s172 + $0x90] sm:$0xff] %vm1078, %v1037
        %1098 = vst.msk [vmem:[%s172 + $0x98] sm:$0xff] %vm1078, %v1040
        %1099 = vst.msk [vmem:[%s172 + $0xa0] sm:$0xff] %vm1078, %v1043
        %1100 = vst.msk [vmem:[%s172 + $0xa8] sm:$0xff] %vm1078, %v1046
        %1101 = vst.msk [vmem:[%s172 + $0xb0] sm:$0xff] %vm1078, %v1049
        %1102 = vst.msk [vmem:[%s172 + $0xb8] sm:$0xff] %vm1078, %v1052
        %1103 = vst.msk [vmem:[%s172 + $0xc0] sm:$0xff] %vm1078, %v1055
        %1104 = vst.msk [vmem:[%s172 + $0xc8] sm:$0xff] %vm1078, %v1058
        %1105 = vst.msk [vmem:[%s172 + $0xd0] sm:$0xff] %vm1078, %v1061
        %1106 = vst.msk [vmem:[%s172 + $0xd8] sm:$0xff] %vm1078, %v1064
        %1107 = vst.msk [vmem:[%s172 + $0xe0] sm:$0xff] %vm1078, %v1067
        %1108 = vst.msk [vmem:[%s172 + $0xe8] sm:$0xff] %vm1078, %v1070
        %1109 = vst.msk [vmem:[%s172 + $0xf0] sm:$0xff] %vm1078, %v1073
        %1110 = vst.msk [vmem:[%s172 + $0xf8] sm:$0xff] %vm1078, %v1076
        %s1111 = sand.u32 %s90, 1
        %s1112 = sand.u32 %s90, 1
        %s1113 = smul.addr %s1112, 256
        %s1114 = scalar_lea.vmem [#allocation2], %s1113
        // Predicated region
        $region33: #{tpu_custom_call.1} parent=31 // pred_check
          %p1115 = pneg %p100
        $region34: #{tpu_custom_call.1} parent=31 // pred_check_branch
          %1117 = sbr.rel (%p1115) target = $region36
        $region35: #{tpu_custom_call.1} parent=31 // pred_region
          %s1118 = smul.u32 32, %s14
          %s1119 = ssub.s32 63, %s1118
          %p1120 = scmp.lt.s32.totalorder %s1119, 32
          %s1121 = scalar_select %p1120, %s1119, 32
          %s1122 = smul.u32 8, %s1121
          %p1123 = scmp.ne.s32.totalorder 0, %s1122
          %s1124 = smul.addr %s1118, 8
          %s1125 = scalar_lea.vmem %s3, %s1124
          // Predicated region
          $region37: #{tpu_custom_call.1} parent=35 // pred_check
            %p1126 = pneg %p1123
          $region38: #{tpu_custom_call.1} parent=35 // pred_check_branch
            %1128 = sbr.rel (%p1126) target = $region40
          $region39: #{tpu_custom_call.1} parent=35 // pred_region
            // Predicated region
            $region41: #{tpu_custom_call.1} parent=39 // pred_check
              _
            $region42: #{tpu_custom_call.1} parent=39 // pred_check_branch
              %1130 = sbr.rel (0) target = $region44
            $region43: #{tpu_custom_call.1} parent=39 // pred_region
              // Predicated region
              $region63: #{tpu_custom_call.1} parent=43 // pred_check
                _
              $region64: #{tpu_custom_call.1} parent=43 // pred_check_branch
                %1242 = sbr.rel (0) target = $region66
              $region65: #{tpu_custom_call.1} parent=43 // pred_region
                %s1243 = sshrl.u32 %s1121, 5
                // While loop
                $region67: #{tpu_custom_call.1} parent=65 // loop_pre_header
                  _
                $region68: #{tpu_custom_call.1} parent=65 // loop_header
                  %s1245 = sphi 0, %s1247
                  %p1246 = scmp.ge.s32.totalorder %s1245, %s1243
                  %s1250 = sphi 0, %s1319
                  %s1251 = sphi %s1114, %s1322
                  %s1252 = sphi %s1125, %s1323
                $region69: #{tpu_custom_call.1} parent=65 // loop_header_branch
                  %1249 = sbr.rel (%p1246) target = $region73
                $region70: #{tpu_custom_call.1} parent=65 // loop_body
                  %v1253 = vld [vmem:[%s1251] sm:$0xff]
                  %1254 = vst [vmem:[%s1252] sm:$0xff] %v1253
                  %v1255 = vld [vmem:[%s1251 + $0x8] sm:$0xff]
                  %1256 = vst [vmem:[%s1252 + $0x8] sm:$0xff] %v1255
                  %v1257 = vld [vmem:[%s1251 + $0x10] sm:$0xff]
                  %1258 = vst [vmem:[%s1252 + $0x10] sm:$0xff] %v1257
                  %v1259 = vld [vmem:[%s1251 + $0x18] sm:$0xff]
                  %1260 = vst [vmem:[%s1252 + $0x18] sm:$0xff] %v1259
                  %v1261 = vld [vmem:[%s1251 + $0x20] sm:$0xff]
                  %1262 = vst [vmem:[%s1252 + $0x20] sm:$0xff] %v1261
                  %v1263 = vld [vmem:[%s1251 + $0x28] sm:$0xff]
                  %1264 = vst [vmem:[%s1252 + $0x28] sm:$0xff] %v1263
                  %v1265 = vld [vmem:[%s1251 + $0x30] sm:$0xff]
                  %1266 = vst [vmem:[%s1252 + $0x30] sm:$0xff] %v1265
                  %v1267 = vld [vmem:[%s1251 + $0x38] sm:$0xff]
                  %1268 = vst [vmem:[%s1252 + $0x38] sm:$0xff] %v1267
                  %v1269 = vld [vmem:[%s1251 + $0x40] sm:$0xff]
                  %1270 = vst [vmem:[%s1252 + $0x40] sm:$0xff] %v1269
                  %v1271 = vld [vmem:[%s1251 + $0x48] sm:$0xff]
                  %1272 = vst [vmem:[%s1252 + $0x48] sm:$0xff] %v1271
                  %v1273 = vld [vmem:[%s1251 + $0x50] sm:$0xff]
                  %1274 = vst [vmem:[%s1252 + $0x50] sm:$0xff] %v1273
                  %v1275 = vld [vmem:[%s1251 + $0x58] sm:$0xff]
                  %1276 = vst [vmem:[%s1252 + $0x58] sm:$0xff] %v1275
                  %v1277 = vld [vmem:[%s1251 + $0x60] sm:$0xff]
                  %1278 = vst [vmem:[%s1252 + $0x60] sm:$0xff] %v1277
                  %v1279 = vld [vmem:[%s1251 + $0x68] sm:$0xff]
                  %1280 = vst [vmem:[%s1252 + $0x68] sm:$0xff] %v1279
                  %v1281 = vld [vmem:[%s1251 + $0x70] sm:$0xff]
                  %1282 = vst [vmem:[%s1252 + $0x70] sm:$0xff] %v1281
                  %v1283 = vld [vmem:[%s1251 + $0x78] sm:$0xff]
                  %1284 = vst [vmem:[%s1252 + $0x78] sm:$0xff] %v1283
                  %v1285 = vld [vmem:[%s1251 + $0x80] sm:$0xff]
                  %1286 = vst [vmem:[%s1252 + $0x80] sm:$0xff] %v1285
                  %v1287 = vld [vmem:[%s1251 + $0x88] sm:$0xff]
                  %1288 = vst [vmem:[%s1252 + $0x88] sm:$0xff] %v1287
                  %v1289 = vld [vmem:[%s1251 + $0x90] sm:$0xff]
                  %1290 = vst [vmem:[%s1252 + $0x90] sm:$0xff] %v1289
                  %v1291 = vld [vmem:[%s1251 + $0x98] sm:$0xff]
                  %1292 = vst [vmem:[%s1252 + $0x98] sm:$0xff] %v1291
                  %v1293 = vld [vmem:[%s1251 + $0xa0] sm:$0xff]
                  %1294 = vst [vmem:[%s1252 + $0xa0] sm:$0xff] %v1293
                  %v1295 = vld [vmem:[%s1251 + $0xa8] sm:$0xff]
                  %1296 = vst [vmem:[%s1252 + $0xa8] sm:$0xff] %v1295
                  %v1297 = vld [vmem:[%s1251 + $0xb0] sm:$0xff]
                  %1298 = vst [vmem:[%s1252 + $0xb0] sm:$0xff] %v1297
                  %v1299 = vld [vmem:[%s1251 + $0xb8] sm:$0xff]
                  %1300 = vst [vmem:[%s1252 + $0xb8] sm:$0xff] %v1299
                  %v1301 = vld [vmem:[%s1251 + $0xc0] sm:$0xff]
                  %1302 = vst [vmem:[%s1252 + $0xc0] sm:$0xff] %v1301
                  %v1303 = vld [vmem:[%s1251 + $0xc8] sm:$0xff]
                  %1304 = vst [vmem:[%s1252 + $0xc8] sm:$0xff] %v1303
                  %v1305 = vld [vmem:[%s1251 + $0xd0] sm:$0xff]
                  %1306 = vst [vmem:[%s1252 + $0xd0] sm:$0xff] %v1305
                  %v1307 = vld [vmem:[%s1251 + $0xd8] sm:$0xff]
                  %1308 = vst [vmem:[%s1252 + $0xd8] sm:$0xff] %v1307
                  %v1309 = vld [vmem:[%s1251 + $0xe0] sm:$0xff]
                  %1310 = vst [vmem:[%s1252 + $0xe0] sm:$0xff] %v1309
                  %v1311 = vld [vmem:[%s1251 + $0xe8] sm:$0xff]
                  %1312 = vst [vmem:[%s1252 + $0xe8] sm:$0xff] %v1311
                  %v1313 = vld [vmem:[%s1251 + $0xf0] sm:$0xff]
                  %1314 = vst [vmem:[%s1252 + $0xf0] sm:$0xff] %v1313
                  %v1315 = vld [vmem:[%s1251 + $0xf8] sm:$0xff]
                  %1316 = vst [vmem:[%s1252 + $0xf8] sm:$0xff] %v1315
                  %s1317 = sadd.s32 1, %s1250
                  %p1318 = scmp.ge.s32.totalorder %s1317, %s1243
                  %s1319 = scalar_select %p1318, 0, %s1317
                  %s1320 = smul.u32 %s1319, 256
                  %s1321 = smul.u32 %s1319, 256
                  %s1322 = scalar_lea.vmem %s1114, %s1320 [#allocation2]
                  %s1323 = scalar_lea.vmem %s1125, %s1321
                $region71: #{tpu_custom_call.1} parent=65 // loop_footer
                  %s1247 = sadd.s32 %s1245, 1
                $region72: #{tpu_custom_call.1} parent=65 // loop_footer_branch
                  %1244 = sbr.rel target = $region68
                $region73: #{tpu_custom_call.1} parent=65 // loop_exit
                  _
                %s1324 = sshrl.u32 %s1121, 5
                %s1325 = sand.u32 %s1121, 31
                %s1326 = smul.u32 %s1324, 32
                %s1327 = smul.u32 8, %s1326
                %s1328 = scalar_lea.vmem %s1114, %s1327 [#allocation2]
                %s1329 = smul.u32 8, %s1326
                %s1330 = scalar_lea.vmem %s1125, %s1329
                // While loop
                $region74: #{tpu_custom_call.1} parent=65 // loop_pre_header
                  _
                $region75: #{tpu_custom_call.1} parent=65 // loop_header
                  %s1332 = sphi 0, %s1334
                  %p1333 = scmp.ge.s32.totalorder %s1332, %s1325
                  %s1337 = sphi 0, %s1344
                  %s1338 = sphi %s1328, %s1347
                  %s1339 = sphi %s1330, %s1348
                $region76: #{tpu_custom_call.1} parent=65 // loop_header_branch
                  %1336 = sbr.rel (%p1333) target = $region80
                $region77: #{tpu_custom_call.1} parent=65 // loop_body
                  %v1340 = vld [vmem:[%s1338] sm:$0xff]
                  %1341 = vst [vmem:[%s1339] sm:$0xff] %v1340
                  %s1342 = sadd.s32 1, %s1337
                  %p1343 = scmp.ge.s32.totalorder %s1342, %s1325
                  %s1344 = scalar_select %p1343, 0, %s1342
                  %s1345 = smul.u32 %s1344, 8
                  %s1346 = smul.u32 %s1344, 8
                  %s1347 = scalar_lea.vmem %s1328, %s1345 [#allocation2]
                  %s1348 = scalar_lea.vmem %s1330, %s1346
                $region78: #{tpu_custom_call.1} parent=65 // loop_footer
                  %s1334 = sadd.s32 %s1332, 1
                $region79: #{tpu_custom_call.1} parent=65 // loop_footer_branch
                  %1331 = sbr.rel target = $region75
                $region80: #{tpu_custom_call.1} parent=65 // loop_exit
                  _
              $region66: #{tpu_custom_call.1} parent=43 // pred_fallthru
                _
              // Predicated region
              $region81: #{tpu_custom_call.1} parent=43 // pred_check
                _
              $region82: #{tpu_custom_call.1} parent=43 // pred_check_branch
                %1350 = sbr.rel target = $region84
              $region83: #{tpu_custom_call.1} parent=43 // pred_region
                _
              $region84: #{tpu_custom_call.1} parent=43 // pred_fallthru
                _
            $region44: #{tpu_custom_call.1} parent=39 // pred_fallthru
              _
            // Predicated region
            $region45: #{tpu_custom_call.1} parent=39 // pred_check
              _
            $region46: #{tpu_custom_call.1} parent=39 // pred_check_branch
              %1132 = sbr.rel target = $region48
            $region47: #{tpu_custom_call.1} parent=39 // pred_region
              %s1134 = ssub.s32 256, 1
              %s1135 = sshrl.u32 %s1121, 5
              // While loop
              $region49: #{tpu_custom_call.1} parent=47 // loop_pre_header
                _
              $region50: #{tpu_custom_call.1} parent=47 // loop_header
                %s1137 = sphi 0, %s1139
                %p1138 = scmp.ge.s32.totalorder %s1137, %s1135
                %s1142 = sphi 0, %s1211
                %s1143 = sphi %s1114, %s1214
                %s1144 = sphi %s1125, %s1215
              $region51: #{tpu_custom_call.1} parent=47 // loop_header_branch
                %1141 = sbr.rel (%p1138) target = $region55
              $region52: #{tpu_custom_call.1} parent=47 // loop_body
                %v1145 = vld [vmem:[%s1143] sm:%s1134]
                %1146 = vst [vmem:[%s1144] sm:%s1134] %v1145
                %v1147 = vld [vmem:[%s1143 + $0x8] sm:%s1134]
                %1148 = vst [vmem:[%s1144 + $0x8] sm:%s1134] %v1147
                %v1149 = vld [vmem:[%s1143 + $0x10] sm:%s1134]
                %1150 = vst [vmem:[%s1144 + $0x10] sm:%s1134] %v1149
                %v1151 = vld [vmem:[%s1143 + $0x18] sm:%s1134]
                %1152 = vst [vmem:[%s1144 + $0x18] sm:%s1134] %v1151
                %v1153 = vld [vmem:[%s1143 + $0x20] sm:%s1134]
                %1154 = vst [vmem:[%s1144 + $0x20] sm:%s1134] %v1153
                %v1155 = vld [vmem:[%s1143 + $0x28] sm:%s1134]
                %1156 = vst [vmem:[%s1144 + $0x28] sm:%s1134] %v1155
                %v1157 = vld [vmem:[%s1143 + $0x30] sm:%s1134]
                %1158 = vst [vmem:[%s1144 + $0x30] sm:%s1134] %v1157
                %v1159 = vld [vmem:[%s1143 + $0x38] sm:%s1134]
                %1160 = vst [vmem:[%s1144 + $0x38] sm:%s1134] %v1159
                %v1161 = vld [vmem:[%s1143 + $0x40] sm:%s1134]
                %1162 = vst [vmem:[%s1144 + $0x40] sm:%s1134] %v1161
                %v1163 = vld [vmem:[%s1143 + $0x48] sm:%s1134]
                %1164 = vst [vmem:[%s1144 + $0x48] sm:%s1134] %v1163
                %v1165 = vld [vmem:[%s1143 + $0x50] sm:%s1134]
                %1166 = vst [vmem:[%s1144 + $0x50] sm:%s1134] %v1165
                %v1167 = vld [vmem:[%s1143 + $0x58] sm:%s1134]
                %1168 = vst [vmem:[%s1144 + $0x58] sm:%s1134] %v1167
                %v1169 = vld [vmem:[%s1143 + $0x60] sm:%s1134]
                %1170 = vst [vmem:[%s1144 + $0x60] sm:%s1134] %v1169
                %v1171 = vld [vmem:[%s1143 + $0x68] sm:%s1134]
                %1172 = vst [vmem:[%s1144 + $0x68] sm:%s1134] %v1171
                %v1173 = vld [vmem:[%s1143 + $0x70] sm:%s1134]
                %1174 = vst [vmem:[%s1144 + $0x70] sm:%s1134] %v1173
                %v1175 = vld [vmem:[%s1143 + $0x78] sm:%s1134]
                %1176 = vst [vmem:[%s1144 + $0x78] sm:%s1134] %v1175
                %v1177 = vld [vmem:[%s1143 + $0x80] sm:%s1134]
                %1178 = vst [vmem:[%s1144 + $0x80] sm:%s1134] %v1177
                %v1179 = vld [vmem:[%s1143 + $0x88] sm:%s1134]
                %1180 = vst [vmem:[%s1144 + $0x88] sm:%s1134] %v1179
                %v1181 = vld [vmem:[%s1143 + $0x90] sm:%s1134]
                %1182 = vst [vmem:[%s1144 + $0x90] sm:%s1134] %v1181
                %v1183 = vld [vmem:[%s1143 + $0x98] sm:%s1134]
                %1184 = vst [vmem:[%s1144 + $0x98] sm:%s1134] %v1183
                %v1185 = vld [vmem:[%s1143 + $0xa0] sm:%s1134]
                %1186 = vst [vmem:[%s1144 + $0xa0] sm:%s1134] %v1185
                %v1187 = vld [vmem:[%s1143 + $0xa8] sm:%s1134]
                %1188 = vst [vmem:[%s1144 + $0xa8] sm:%s1134] %v1187
                %v1189 = vld [vmem:[%s1143 + $0xb0] sm:%s1134]
                %1190 = vst [vmem:[%s1144 + $0xb0] sm:%s1134] %v1189
                %v1191 = vld [vmem:[%s1143 + $0xb8] sm:%s1134]
                %1192 = vst [vmem:[%s1144 + $0xb8] sm:%s1134] %v1191
                %v1193 = vld [vmem:[%s1143 + $0xc0] sm:%s1134]
                %1194 = vst [vmem:[%s1144 + $0xc0] sm:%s1134] %v1193
                %v1195 = vld [vmem:[%s1143 + $0xc8] sm:%s1134]
                %1196 = vst [vmem:[%s1144 + $0xc8] sm:%s1134] %v1195
                %v1197 = vld [vmem:[%s1143 + $0xd0] sm:%s1134]
                %1198 = vst [vmem:[%s1144 + $0xd0] sm:%s1134] %v1197
                %v1199 = vld [vmem:[%s1143 + $0xd8] sm:%s1134]
                %1200 = vst [vmem:[%s1144 + $0xd8] sm:%s1134] %v1199
                %v1201 = vld [vmem:[%s1143 + $0xe0] sm:%s1134]
                %1202 = vst [vmem:[%s1144 + $0xe0] sm:%s1134] %v1201
                %v1203 = vld [vmem:[%s1143 + $0xe8] sm:%s1134]
                %1204 = vst [vmem:[%s1144 + $0xe8] sm:%s1134] %v1203
                %v1205 = vld [vmem:[%s1143 + $0xf0] sm:%s1134]
                %1206 = vst [vmem:[%s1144 + $0xf0] sm:%s1134] %v1205
                %v1207 = vld [vmem:[%s1143 + $0xf8] sm:%s1134]
                %1208 = vst [vmem:[%s1144 + $0xf8] sm:%s1134] %v1207
                %s1209 = sadd.s32 1, %s1142
                %p1210 = scmp.ge.s32.totalorder %s1209, %s1135
                %s1211 = scalar_select %p1210, 0, %s1209
                %s1212 = smul.u32 %s1211, 256
                %s1213 = smul.u32 %s1211, 256
                %s1214 = scalar_lea.vmem %s1114, %s1212 [#allocation2]
                %s1215 = scalar_lea.vmem %s1125, %s1213
              $region53: #{tpu_custom_call.1} parent=47 // loop_footer
                %s1139 = sadd.s32 %s1137, 1
              $region54: #{tpu_custom_call.1} parent=47 // loop_footer_branch
                %1136 = sbr.rel target = $region50
              $region55: #{tpu_custom_call.1} parent=47 // loop_exit
                _
              %s1216 = sshrl.u32 %s1121, 5
              %s1217 = sand.u32 %s1121, 31
              %s1218 = smul.u32 %s1216, 32
              %s1219 = smul.u32 8, %s1218
              %s1220 = scalar_lea.vmem %s1114, %s1219 [#allocation2]
              %s1221 = smul.u32 8, %s1218
              %s1222 = scalar_lea.vmem %s1125, %s1221
              // While loop
              $region56: #{tpu_custom_call.1} parent=47 // loop_pre_header
                _
              $region57: #{tpu_custom_call.1} parent=47 // loop_header
                %s1224 = sphi 0, %s1226
                %p1225 = scmp.ge.s32.totalorder %s1224, %s1217
                %s1229 = sphi 0, %s1236
                %s1230 = sphi %s1220, %s1239
                %s1231 = sphi %s1222, %s1240
              $region58: #{tpu_custom_call.1} parent=47 // loop_header_branch
                %1228 = sbr.rel (%p1225) target = $region62
              $region59: #{tpu_custom_call.1} parent=47 // loop_body
                %v1232 = vld [vmem:[%s1230] sm:%s1134]
                %1233 = vst [vmem:[%s1231] sm:%s1134] %v1232
                %s1234 = sadd.s32 1, %s1229
                %p1235 = scmp.ge.s32.totalorder %s1234, %s1217
                %s1236 = scalar_select %p1235, 0, %s1234
                %s1237 = smul.u32 %s1236, 8
                %s1238 = smul.u32 %s1236, 8
                %s1239 = scalar_lea.vmem %s1220, %s1237 [#allocation2]
                %s1240 = scalar_lea.vmem %s1222, %s1238
              $region60: #{tpu_custom_call.1} parent=47 // loop_footer
                %s1226 = sadd.s32 %s1224, 1
              $region61: #{tpu_custom_call.1} parent=47 // loop_footer_branch
                %1223 = sbr.rel target = $region57
              $region62: #{tpu_custom_call.1} parent=47 // loop_exit
                _
            $region48: #{tpu_custom_call.1} parent=39 // pred_fallthru
              _
          $region40: #{tpu_custom_call.1} parent=35 // pred_fallthru
            _
          %1351 = vnop
        $region36: #{tpu_custom_call.1} parent=31 // pred_fallthru
          _
      $region32: #{tpu_custom_call.1} parent=5 // pred_fallthru
        _
      %p1352 = scmp.le.s32.totalorder 2, %s9
      // Predicated region
      $region85: #{tpu_custom_call.1} parent=5 // pred_check
        %p1353 = pneg %p1352
      $region86: #{tpu_custom_call.1} parent=5 // pred_check_branch
        %1355 = sbr.rel (%p1353) target = $region88
      $region87: #{tpu_custom_call.1} parent=5 // pred_region
        %s1356 = ssub.s32 %s9, 2
        // Predicated region
        $region89: #{tpu_custom_call.1} parent=87 // pred_check
          %p1357 = pneg %p106
        $region90: #{tpu_custom_call.1} parent=87 // pred_check_branch
          %1359 = sbr.rel (%p1357) target = $region92
        $region91: #{tpu_custom_call.1} parent=87 // pred_region
          %s1360 = sand.u32 %s91, 1
          %s1361 = sand.u32 %s91, 1
          %s1362 = smul.addr %s1361, 256
          %s1363 = scalar_lea.vmem [#allocation2], %s1362
        $region92: #{tpu_custom_call.1} parent=87 // pred_fallthru
          _
      $region88: #{tpu_custom_call.1} parent=5 // pred_fallthru
        _
    $region6: #{tpu_custom_call.1} parent=1 // loop_footer
      %s13 = sadd.s32 1, %s9
    $region7: #{tpu_custom_call.1} parent=1 // loop_footer_branch
      %8 = sbr.rel target = $region3
    $region8: #{tpu_custom_call.1} parent=1 // loop_exit
      _

</llo_original>
